<compile_context>
chip_gen: v7x
topology: tpu7x:2x2x1
jax: 0.10.0
libtpu: 0.0.40
codegen_flags: <defaults>
</compile_context>

<pallas_src>
import jax
import jax.numpy as jnp
import numpy as np
from jax import lax
from jax.experimental import pallas as pl
from jax.experimental.pallas import tpu as pltpu

_VMEM_LIMIT = 48 * 1024 * 1024


# ---------------------------------------------------------------------------
# Kernel 1: bidirectional LSTM (single layer).
#   x_ref  : (T*B, D)  time-major-flattened BERT hidden states
#   wih    : (D, 8H)   [W_ih_fwd | W_ih_bwd]   (transposed)
#   whh_f/b: (H, 4H)   recurrent weights (transposed)
#   b      : (1, 8H)   [b_fwd | b_bwd]  (b_ih + b_hh)
#   out    : (2, T, B, H)   out[0]=forward hiddens, out[1]=backward hiddens
# PyTorch gate order: i, f, g, o.
# ---------------------------------------------------------------------------
def bilstm_kernel(x_ref, wih_ref, whf_ref, whb_ref, b_ref, out_ref,
                  gf_ref, gb_ref):
    T = out_ref.shape[1]
    B = out_ref.shape[2]
    H = whf_ref.shape[0]

    # ---- hoisted input projection: one big MXU matmul for both directions ----
    x = x_ref[...].astype(jnp.bfloat16)                       # (T*B, D)
    w_in = wih_ref[...].astype(jnp.bfloat16)                  # (D, 8H)
    g_all = jnp.dot(x, w_in, preferred_element_type=jnp.float32) + b_ref[...]
    gf_ref[...] = g_all[:, :4 * H]                            # forward gate pre-acts
    gb_ref[...] = g_all[:, 4 * H:]                            # backward gate pre-acts

    # hoisted weight loads (read VMEM once, reuse across all timesteps)
    whf = whf_ref[...].astype(jnp.bfloat16)
    whb = whb_ref[...].astype(jnp.bfloat16)

    def act(pre):
        i_g = jax.nn.sigmoid(pre[:, 0 * H:1 * H])
        f_g = jax.nn.sigmoid(pre[:, 1 * H:2 * H])
        g_g = jnp.tanh(pre[:, 2 * H:3 * H])
        o_g = jax.nn.sigmoid(pre[:, 3 * H:4 * H])
        return i_g, f_g, g_g, o_g

    def body(s, carry):
        hf, cf, hb, cb = carry
        tb = T - 1 - s
        # forward / backward chains are independent: interleave them so the two
        # small recurrent matmuls overlap in the MXU pipeline.
        pre_f = gf_ref[pl.ds(s * B, B), :] + jnp.dot(
            hf.astype(jnp.bfloat16), whf, preferred_element_type=jnp.float32)
        pre_b = gb_ref[pl.ds(tb * B, B), :] + jnp.dot(
            hb.astype(jnp.bfloat16), whb, preferred_element_type=jnp.float32)

        i_f, f_f, g_f, o_f = act(pre_f)
        cf = f_f * cf + i_f * g_f
        hf = o_f * jnp.tanh(cf)

        i_b, f_b, g_b, o_b = act(pre_b)
        cb = f_b * cb + i_b * g_b
        hb = o_b * jnp.tanh(cb)

        out_ref[0, s] = hf
        out_ref[1, tb] = hb
        return hf, cf, hb, cb

    z = jnp.zeros((B, H), jnp.float32)
    lax.fori_loop(0, T, body, (z, z, z, z))


# ---------------------------------------------------------------------------
# Kernel 2: fused start/end projection heads.
#   x (RT, 2H) @ w (2H, 2*(d+1)) -> relu -> split into xb (RT, d+1), yb (RT, d+1)
# The biaffine bias column is baked into w/b (zero weight column, bias 1.0).
# ---------------------------------------------------------------------------
def proj_kernel(x_ref, w_ref, b_ref, xb_ref, yb_ref):
    h = xb_ref.shape[1]
    x = x_ref[...].astype(jnp.bfloat16)
    w = w_ref[...].astype(jnp.bfloat16)
    z = jnp.dot(x, w, preferred_element_type=jnp.float32) + b_ref[...]
    z = jnp.maximum(z, 0.0)
    xb_ref[...] = z[:, :h]
    yb_ref[...] = z[:, h:]


# ---------------------------------------------------------------------------
# Kernel 3: biaffine scorer.  Grid = (B,); one program = one batch element,
# all tags.   out[b, o, i, j] = sum_{p,q} x[b,i,p] * U[o,p,q] * y[b,j,q]
# ---------------------------------------------------------------------------
def biaffine_kernel(x_ref, y_ref, u_ref, out_ref):
    n_tags = u_ref.shape[0]
    x = x_ref[0].astype(jnp.bfloat16)            # (T, h)
    y = y_ref[0].astype(jnp.bfloat16)            # (T, h)
    for o in range(n_tags):                      # static, unrolled over tags
        u_o = u_ref[o].astype(jnp.bfloat16)      # (h, h)
        xu = jnp.dot(x, u_o, preferred_element_type=jnp.float32)        # (T, h)
        out_ref[0, o] = lax.dot_general(
            xu.astype(jnp.bfloat16), y, (((1,), (1,)), ((), ())),
            preferred_element_type=jnp.float32)                          # (T, T)


# ---------------------------------------------------------------------------
# Parameter packing for the kernel layouts (one-time, done under jit).
# ---------------------------------------------------------------------------
def _pack_params(p):
    H = p["whh_f"].shape[0]
    zcol = jnp.zeros((2 * H, 1), jnp.float32)
    one = jnp.ones((1, 1), jnp.float32)
    return {
        "wih": jnp.concatenate([p["wih_f"], p["wih_b"]], axis=1),      # (D, 8H)
        "whh_f": p["whh_f"],                                           # (H, 4H)
        "whh_b": p["whh_b"],                                           # (H, 4H)
        "b": jnp.concatenate([p["b_f"], p["b_b"]], axis=1),            # (1, 8H)
        # fused start/end heads with the biaffine bias-ones column folded in:
        #   relu(x @ [W | 0] + [b | 1]) = [relu(x @ W + b) | 1]
        "w_proj": jnp.concatenate([p["w_start"], zcol, p["w_end"], zcol], axis=1),
        "b_proj": jnp.concatenate([p["b_start"], one, p["b_end"], one], axis=1),
        "u": jnp.transpose(p["U"], (1, 0, 2)),                          # (n_tags, h, h)
    }


# ---------------------------------------------------------------------------
# Wrapper: layout glue stays in JAX; all matmuls / recurrence / heads in Pallas.
# ---------------------------------------------------------------------------
def ner_network_forward(last_hidden_state, params):
    B, T, D = last_hidden_state.shape
    H = params["whh_f"].shape[0]
    d = params["w_start"].shape[1]
    n_tags = params["U"].shape[1]
    h = d + 1
    pk = _pack_params(params)

    # nn.Dropout on the BERT hidden state: identity at inference.
    # time-major flatten feeds the hoisted LSTM input projection directly.
    x_flat = jnp.transpose(last_hidden_state, (1, 0, 2)).reshape(T * B, D)

    lstm_out = pl.pallas_call(
        bilstm_kernel,
        out_shape=jax.ShapeDtypeStruct((2, T, B, H), jnp.float32),
        scratch_shapes=[pltpu.VMEM((T * B, 4 * H), jnp.float32),
                        pltpu.VMEM((T * B, 4 * H), jnp.float32)],
        compiler_params=pltpu.CompilerParams(vmem_limit_bytes=_VMEM_LIMIT),
    )(x_flat, pk["wih"], pk["whh_f"], pk["whh_b"], pk["b"])

    # (2, T, B, H) -> (B*T, 2H): single layout pass (direction concat is fused).
    lstm_bt = jnp.transpose(lstm_out, (2, 1, 0, 3)).reshape(B * T, 2 * H)

    BT = B * T
    RT = 256 if BT % 256 == 0 else BT          # row tile for the projection heads
    xb_flat, yb_flat = pl.pallas_call(
        proj_kernel,
        out_shape=(jax.ShapeDtypeStruct((BT, h), jnp.float32),
                   jax.ShapeDtypeStruct((BT, h), jnp.float32)),
        grid=(BT // RT,),
        in_specs=[pl.BlockSpec((RT, 2 * H), lambda i: (i, 0)),
                  pl.BlockSpec((2 * H, 2 * h), lambda i: (0, 0)),
                  pl.BlockSpec((1, 2 * h), lambda i: (0, 0))],
        out_specs=(pl.BlockSpec((RT, h), lambda i: (i, 0)),
                   pl.BlockSpec((RT, h), lambda i: (i, 0))),
        compiler_params=pltpu.CompilerParams(
            dimension_semantics=("parallel",), vmem_limit_bytes=_VMEM_LIMIT),
    )(lstm_bt, pk["w_proj"], pk["b_proj"])

    xb = xb_flat.reshape(B, T, h)
    yb = yb_flat.reshape(B, T, h)

    span = pl.pallas_call(
        biaffine_kernel,
        out_shape=jax.ShapeDtypeStruct((B, n_tags, T, T), jnp.float32),
        grid=(B,),
        in_specs=[pl.BlockSpec((1, T, h), lambda b: (b, 0, 0)),
                  pl.BlockSpec((1, T, h), lambda b: (b, 0, 0)),
                  pl.BlockSpec((n_tags, h, h), lambda b: (0, 0, 0))],
        out_specs=pl.BlockSpec((1, n_tags, T, T), lambda b: (b, 0, 0, 0)),
        compiler_params=pltpu.CompilerParams(
            dimension_semantics=("parallel",), vmem_limit_bytes=_VMEM_LIMIT),
    )(xb, yb, pk["u"])

    # (B, n_tags, T, T) -> (B, T, T, n_tags)  == PyTorch output layout.
    return jnp.transpose(span, (0, 2, 3, 1))


# ---------------------------------------------------------------------------
# Deterministic parameter init (shapes follow the PyTorch module __init__).
# ---------------------------------------------------------------------------
def init_params(key, D, H, d, n_tags):
    ks = jax.random.split(key, 11)
    s_lstm = 1.0 / np.sqrt(H)
    s_lin = 1.0 / np.sqrt(2 * H)
    return {
        # LSTM, forward direction (stored transposed: W_ih^T, W_hh^T; bias = b_ih + b_hh)
        "wih_f": jax.random.normal(ks[0], (D, 4 * H), jnp.float32) * s_lstm,
        "whh_f": jax.random.normal(ks[1], (H, 4 * H), jnp.float32) * s_lstm,
        "b_f":   jax.random.normal(ks[2], (1, 4 * H), jnp.float32) * s_lstm,
        # LSTM, backward direction
        "wih_b": jax.random.normal(ks[3], (D, 4 * H), jnp.float32) * s_lstm,
        "whh_b": jax.random.normal(ks[4], (H, 4 * H), jnp.float32) * s_lstm,
        "b_b":   jax.random.normal(ks[5], (1, 4 * H), jnp.float32) * s_lstm,
        # start / end projection heads (stored as W^T)
        "w_start": jax.random.normal(ks[6], (2 * H, d), jnp.float32) * s_lin,
        "b_start": jax.random.normal(ks[7], (1, d), jnp.float32) * s_lin,
        "w_end":   jax.random.normal(ks[8], (2 * H, d), jnp.float32) * s_lin,
        "b_end":   jax.random.normal(ks[9], (1, d), jnp.float32) * s_lin,
        # biaffine U: (d+1, n_tags, d+1) as in torch.randn
        "U": jax.random.normal(ks[10], (d + 1, n_tags, d + 1), jnp.float32),
    }


# ---------------------------------------------------------------------------
# Pure-JAX f32 reference (mirrors the PyTorch forward) for correctness check.
# ---------------------------------------------------------------------------
def reference_forward(last_hidden_state, params):
    B, T, D = last_hidden_state.shape
    H = params["whh_f"].shape[0]
    x_tbd = jnp.transpose(last_hidden_state, (1, 0, 2))

    def run_dir(wi, wh, b, reverse):
        h0 = jnp.zeros((B, H), jnp.float32)
        c0 = jnp.zeros((B, H), jnp.float32)
        xs = x_tbd[::-1] if reverse else x_tbd

        def step(carry, x_t):
            h, c = carry
            g = x_t @ wi + h @ wh + b
            i_g = jax.nn.sigmoid(g[:, :H])
            f_g = jax.nn.sigmoid(g[:, H:2 * H])
            g_g = jnp.tanh(g[:, 2 * H:3 * H])
            o_g = jax.nn.sigmoid(g[:, 3 * H:])
            c2 = f_g * c + i_g * g_g
            h2 = o_g * jnp.tanh(c2)
            return (h2, c2), h2

        _, hs = lax.scan(step, (h0, c0), xs)
        return hs[::-1] if reverse else hs

    hf = run_dir(params["wih_f"], params["whh_f"], params["b_f"], False)
    hb = run_dir(params["wih_b"], params["whh_b"], params["b_b"], True)
    lstm_out = jnp.transpose(jnp.concatenate([hf, hb], axis=-1), (1, 0, 2))

    s = jax.nn.relu(lstm_out @ params["w_start"] + params["b_start"][0])
    e = jax.nn.relu(lstm_out @ params["w_end"] + params["b_end"][0])
    ones = jnp.ones(s.shape[:-1] + (1,), jnp.float32)
    x = jnp.concatenate([s, ones], axis=-1)
    y = jnp.concatenate([e, ones], axis=-1)
    return jnp.einsum("bip,poq,bjq->bijo", x, params["U"], y)


if __name__ == "__main__":
    B, T = 2, 8                 # batch, max_length
    D = 32                      # bert hidden_size
    H = 16                      # lstm_hidden_size  (BiLSTM -> 2H = 32)
    d = 24                      # to_biaffine_size
    n_tags = 5

    key = jax.random.PRNGKey(0)
    k_param, k_x = jax.random.split(key)
    params = init_params(k_param, D, H, d, n_tags)
    # stand-in for BERT's last_hidden_state (see TODO(synk) above)
    last_hidden_state = jax.random.normal(k_x, (B, T, D), jnp.float32)

    fwd = jax.jit(ner_network_forward)
    out = jax.block_until_ready(fwd(last_hidden_state, params))
    assert out.shape == (B, T, T, n_tags), out.shape

    ref = np.asarray(reference_forward(last_hidden_state, params))
    out_np = np.asarray(out)
    max_err = float(np.max(np.abs(out_np - ref)))
    # kernels use bf16 matmul operands with f32 accumulation -> loose tolerance
    # vs. the pure-f32 reference (still catches structural bugs, which are O(1)).
    tol = 8e-2 * float(np.max(np.abs(ref))) + 1e-2
    assert max_err <= tol, (max_err, tol)

    print("KERNEL_OK")
</pallas_src>

<mosaic_0001>
module attributes {stable_mosaic.version = 11 : i64} {
  func.func @bilstm_kernel(%arg0: memref<16x32xf32, #tpu.memory_space<vmem>>, %arg1: memref<32x128xf32, #tpu.memory_space<vmem>>, %arg2: memref<16x64xf32, #tpu.memory_space<vmem>>, %arg3: memref<16x64xf32, #tpu.memory_space<vmem>>, %arg4: memref<1x128xf32, #tpu.memory_space<vmem>>, %arg5: memref<2x8x2x16xf32, #tpu.memory_space<vmem>>, %arg6: memref<16x64xf32, #tpu.memory_space<vmem>>, %arg7: memref<16x64xf32, #tpu.memory_space<vmem>>) attributes {dimension_semantics = [], scalar_prefetch = 0 : i64, scratch_operands = 2 : i64, tpu.core_type = #tpu.core_type<tc>} {
    %c0 = arith.constant 0 : index
    %c0_0 = arith.constant 0 : index
    %0 = vector.load %arg0[%c0, %c0_0] : memref<16x32xf32, #tpu.memory_space<vmem>>, vector<16x32xf32>
    %1 = arith.truncf %0 : vector<16x32xf32> to vector<16x32xbf16>
    %c0_1 = arith.constant 0 : index
    %c0_2 = arith.constant 0 : index
    %2 = vector.load %arg1[%c0_1, %c0_2] : memref<32x128xf32, #tpu.memory_space<vmem>>, vector<32x128xf32>
    %3 = arith.truncf %2 : vector<32x128xf32> to vector<32x128xbf16>
    %cst = arith.constant dense<0.000000e+00> : vector<16x128xf32>
    %4 = tpu.matmul %1, %3, %cst {dimension_numbers = #tpu.dot_dimension_numbers<[1], [0], [0], [1], [0, 0, 1, 1], [], []>} : vector<16x32xbf16>, vector<32x128xbf16>, vector<16x128xf32> -> vector<16x128xf32>
    %c0_3 = arith.constant 0 : index
    %c0_4 = arith.constant 0 : index
    %5 = vector.load %arg4[%c0_3, %c0_4] : memref<1x128xf32, #tpu.memory_space<vmem>>, vector<1x128xf32>
    %6 = vector.broadcast %5 : vector<1x128xf32> to vector<16x128xf32>
    %7 = arith.addf %4, %6 : vector<16x128xf32>
    %8 = vector.extract_strided_slice %7 {offsets = [0, 0], sizes = [16, 64], strides = [1, 1]} : vector<16x128xf32> to vector<16x64xf32>
    %c0_5 = arith.constant 0 : index
    %c0_6 = arith.constant 0 : index
    %9 = vector.load %arg6[%c0_5, %c0_6] : memref<16x64xf32, #tpu.memory_space<vmem>>, vector<16x64xf32>
    tpu.vector_store %arg6[%c0_5, %c0_6], %8 {strides = array<i32>} : memref<16x64xf32, #tpu.memory_space<vmem>>, vector<16x64xf32>,
    %10 = vector.extract_strided_slice %7 {offsets = [0, 64], sizes = [16, 64], strides = [1, 1]} : vector<16x128xf32> to vector<16x64xf32>
    %c0_7 = arith.constant 0 : index
    %c0_8 = arith.constant 0 : index
    %11 = vector.load %arg7[%c0_7, %c0_8] : memref<16x64xf32, #tpu.memory_space<vmem>>, vector<16x64xf32>
    tpu.vector_store %arg7[%c0_7, %c0_8], %10 {strides = array<i32>} : memref<16x64xf32, #tpu.memory_space<vmem>>, vector<16x64xf32>,
    %c0_9 = arith.constant 0 : index
    %c0_10 = arith.constant 0 : index
    %12 = vector.load %arg2[%c0_9, %c0_10] : memref<16x64xf32, #tpu.memory_space<vmem>>, vector<16x64xf32>
    %13 = arith.truncf %12 : vector<16x64xf32> to vector<16x64xbf16>
    %c0_11 = arith.constant 0 : index
    %c0_12 = arith.constant 0 : index
    %14 = vector.load %arg3[%c0_11, %c0_12] : memref<16x64xf32, #tpu.memory_space<vmem>>, vector<16x64xf32>
    %15 = arith.truncf %14 : vector<16x64xf32> to vector<16x64xbf16>
    %cst_13 = arith.constant 0.000000e+00 : f32
    %16 = vector.broadcast %cst_13 : f32 to vector<2x16xf32>
    %c0_i32 = arith.constant 0 : i32
    %c8_i32 = arith.constant 8 : i32
    %17 = arith.addi %c0_i32, %c8_i32 : i32
    %c1_i32 = arith.constant 1 : i32
    %18:4 = scf.for %arg8 = %c0_i32 to %17 step %c1_i32 iter_args(%arg9 = %16, %arg10 = %16, %arg11 = %16, %arg12 = %16) -> (vector<2x16xf32>, vector<2x16xf32>, vector<2x16xf32>, vector<2x16xf32>)  : i32 {
      %c7_i32 = arith.constant 7 : i32
      %19 = arith.subi %c7_i32, %arg8 : i32
      %c2_i32 = arith.constant 2 : i32
      %20 = arith.muli %arg8, %c2_i32 : i32
      %21 = arith.index_cast %20 : i32 to index
      %c0_15 = arith.constant 0 : index
      %22 = vector.load %arg6[%21, %c0_15] : memref<16x64xf32, #tpu.memory_space<vmem>>, vector<2x64xf32>
      %23 = arith.truncf %arg9 : vector<2x16xf32> to vector<2x16xbf16>
      %cst_16 = arith.constant dense<0.000000e+00> : vector<2x64xf32>
      %24 = tpu.matmul %23, %13, %cst_16 {dimension_numbers = #tpu.dot_dimension_numbers<[1], [0], [0], [1], [0, 0, 1, 1], [], []>} : vector<2x16xbf16>, vector<16x64xbf16>, vector<2x64xf32> -> vector<2x64xf32>
      %25 = arith.addf %22, %24 : vector<2x64xf32>
      %c2_i32_17 = arith.constant 2 : i32
      %26 = arith.muli %19, %c2_i32_17 : i32
      %27 = arith.index_cast %26 : i32 to index
      %c0_18 = arith.constant 0 : index
      %28 = vector.load %arg7[%27, %c0_18] : memref<16x64xf32, #tpu.memory_space<vmem>>, vector<2x64xf32>
      %29 = arith.truncf %arg11 : vector<2x16xf32> to vector<2x16xbf16>
      %cst_19 = arith.constant dense<0.000000e+00> : vector<2x64xf32>
      %30 = tpu.matmul %29, %15, %cst_19 {dimension_numbers = #tpu.dot_dimension_numbers<[1], [0], [0], [1], [0, 0, 1, 1], [], []>} : vector<2x16xbf16>, vector<16x64xbf16>, vector<2x64xf32> -> vector<2x64xf32>
      %31 = arith.addf %28, %30 : vector<2x64xf32>
      %32 = vector.extract_strided_slice %25 {offsets = [0, 0], sizes = [2, 16], strides = [1, 1]} : vector<2x64xf32> to vector<2x16xf32>
      %33 = arith.negf %32 : vector<2x16xf32>
      %34 = math.exp %33 : vector<2x16xf32>
      %cst_20 = arith.constant 1.000000e+00 : f32
      %35 = vector.broadcast %cst_20 : f32 to vector<2x16xf32>
      %36 = arith.addf %35, %34 : vector<2x16xf32>
      %37 = arith.divf %35, %36 : vector<2x16xf32>
      %38 = vector.extract_strided_slice %25 {offsets = [0, 16], sizes = [2, 16], strides = [1, 1]} : vector<2x64xf32> to vector<2x16xf32>
      %39 = arith.negf %38 : vector<2x16xf32>
      %40 = math.exp %39 : vector<2x16xf32>
      %cst_21 = arith.constant 1.000000e+00 : f32
      %41 = vector.broadcast %cst_21 : f32 to vector<2x16xf32>
      %42 = arith.addf %41, %40 : vector<2x16xf32>
      %43 = arith.divf %41, %42 : vector<2x16xf32>
      %44 = vector.extract_strided_slice %25 {offsets = [0, 32], sizes = [2, 16], strides = [1, 1]} : vector<2x64xf32> to vector<2x16xf32>
      %45 = math.tanh %44 : vector<2x16xf32>
      %46 = vector.extract_strided_slice %25 {offsets = [0, 48], sizes = [2, 16], strides = [1, 1]} : vector<2x64xf32> to vector<2x16xf32>
      %47 = arith.negf %46 : vector<2x16xf32>
      %48 = math.exp %47 : vector<2x16xf32>
      %cst_22 = arith.constant 1.000000e+00 : f32
      %49 = vector.broadcast %cst_22 : f32 to vector<2x16xf32>
      %50 = arith.addf %49, %48 : vector<2x16xf32>
      %51 = arith.divf %49, %50 : vector<2x16xf32>
      %52 = arith.mulf %43, %arg10 : vector<2x16xf32>
      %53 = arith.mulf %37, %45 : vector<2x16xf32>
      %54 = arith.addf %52, %53 : vector<2x16xf32>
      %55 = math.tanh %54 : vector<2x16xf32>
      %56 = arith.mulf %51, %55 : vector<2x16xf32>
      %57 = vector.extract_strided_slice %31 {offsets = [0, 0], sizes = [2, 16], strides = [1, 1]} : vector<2x64xf32> to vector<2x16xf32>
      %58 = arith.negf %57 : vector<2x16xf32>
      %59 = math.exp %58 : vector<2x16xf32>
      %cst_23 = arith.constant 1.000000e+00 : f32
      %60 = vector.broadcast %cst_23 : f32 to vector<2x16xf32>
      %61 = arith.addf %60, %59 : vector<2x16xf32>
      %62 = arith.divf %60, %61 : vector<2x16xf32>
      %63 = vector.extract_strided_slice %31 {offsets = [0, 16], sizes = [2, 16], strides = [1, 1]} : vector<2x64xf32> to vector<2x16xf32>
      %64 = arith.negf %63 : vector<2x16xf32>
      %65 = math.exp %64 : vector<2x16xf32>
      %cst_24 = arith.constant 1.000000e+00 : f32
      %66 = vector.broadcast %cst_24 : f32 to vector<2x16xf32>
      %67 = arith.addf %66, %65 : vector<2x16xf32>
      %68 = arith.divf %66, %67 : vector<2x16xf32>
      %69 = vector.extract_strided_slice %31 {offsets = [0, 32], sizes = [2, 16], strides = [1, 1]} : vector<2x64xf32> to vector<2x16xf32>
      %70 = math.tanh %69 : vector<2x16xf32>
      %71 = vector.extract_strided_slice %31 {offsets = [0, 48], sizes = [2, 16], strides = [1, 1]} : vector<2x64xf32> to vector<2x16xf32>
      %72 = arith.negf %71 : vector<2x16xf32>
      %73 = math.exp %72 : vector<2x16xf32>
      %cst_25 = arith.constant 1.000000e+00 : f32
      %74 = vector.broadcast %cst_25 : f32 to vector<2x16xf32>
      %75 = arith.addf %74, %73 : vector<2x16xf32>
      %76 = arith.divf %74, %75 : vector<2x16xf32>
      %77 = arith.mulf %68, %arg12 : vector<2x16xf32>
      %78 = arith.mulf %62, %70 : vector<2x16xf32>
      %79 = arith.addf %77, %78 : vector<2x16xf32>
      %80 = math.tanh %79 : vector<2x16xf32>
      %81 = arith.mulf %76, %80 : vector<2x16xf32>
      %c0_26 = arith.constant 0 : index
      %82 = arith.index_cast %arg8 : i32 to index
      %c0_27 = arith.constant 0 : index
      %c0_28 = arith.constant 0 : index
      %83 = vector.load %arg5[%c0_26, %82, %c0_27, %c0_28] : memref<2x8x2x16xf32, #tpu.memory_space<vmem>>, vector<1x1x2x16xf32>
      %84 = vector.shape_cast %83 : vector<1x1x2x16xf32> to vector<2x16xf32>
      %85 = vector.shape_cast %56 : vector<2x16xf32> to vector<1x1x2x16xf32>
      tpu.vector_store %arg5[%c0_26, %82, %c0_27, %c0_28], %85 {strides = array<i32>} : memref<2x8x2x16xf32, #tpu.memory_space<vmem>>, vector<1x1x2x16xf32>,
      %c1 = arith.constant 1 : index
      %86 = arith.index_cast %19 : i32 to index
      %c0_29 = arith.constant 0 : index
      %c0_30 = arith.constant 0 : index
      %87 = vector.load %arg5[%c1, %86, %c0_29, %c0_30] : memref<2x8x2x16xf32, #tpu.memory_space<vmem>>, vector<1x1x2x16xf32>
      %88 = vector.shape_cast %87 : vector<1x1x2x16xf32> to vector<2x16xf32>
      %89 = vector.shape_cast %81 : vector<2x16xf32> to vector<1x1x2x16xf32>
      tpu.vector_store %arg5[%c1, %86, %c0_29, %c0_30], %89 {strides = array<i32>} : memref<2x8x2x16xf32, #tpu.memory_space<vmem>>, vector<1x1x2x16xf32>,
      scf.yield %56, %54, %81, %79 : vector<2x16xf32>, vector<2x16xf32>, vector<2x16xf32>, vector<2x16xf32>
    }
    %c8_i32_14 = arith.constant 8 : i32
    return
  }
}

module attributes {stable_mosaic.version = 11 : i64} {
  func.func @proj_kernel(%arg0: i32, %arg1: memref<16x32xf32, #tpu.memory_space<vmem>>, %arg2: memref<32x50xf32, #tpu.memory_space<vmem>>, %arg3: memref<1x50xf32, #tpu.memory_space<vmem>>, %arg4: memref<16x25xf32, #tpu.memory_space<vmem>>, %arg5: memref<16x25xf32, #tpu.memory_space<vmem>>) attributes {dimension_semantics = [#tpu.dimension_semantics<parallel>], iteration_bounds = array<i64: 1>, scalar_prefetch = 0 : i64, scratch_operands = 0 : i64, tpu.core_type = #tpu.core_type<tc>, window_params = [{transform_indices = @transform_0, window_bounds = array<i64: 16, 32>}, {pipeline_mode = #tpu.pipeline_mode<synchronous>, transform_indices = @transform_1, window_bounds = array<i64: 32, 50>}, {pipeline_mode = #tpu.pipeline_mode<synchronous>, transform_indices = @transform_2, window_bounds = array<i64: 1, 50>}, {transform_indices = @transform_3, window_bounds = array<i64: 16, 25>}, {transform_indices = @transform_4, window_bounds = array<i64: 16, 25>}]} {
    %c0 = arith.constant 0 : index
    %c0_0 = arith.constant 0 : index
    %0 = vector.load %arg1[%c0, %c0_0] : memref<16x32xf32, #tpu.memory_space<vmem>>, vector<16x32xf32>
    %1 = arith.truncf %0 : vector<16x32xf32> to vector<16x32xbf16>
    %c0_1 = arith.constant 0 : index
    %c0_2 = arith.constant 0 : index
    %2 = vector.load %arg2[%c0_1, %c0_2] : memref<32x50xf32, #tpu.memory_space<vmem>>, vector<32x50xf32>
    %3 = arith.truncf %2 : vector<32x50xf32> to vector<32x50xbf16>
    %cst = arith.constant dense<0.000000e+00> : vector<16x50xf32>
    %4 = tpu.matmul %1, %3, %cst {dimension_numbers = #tpu.dot_dimension_numbers<[1], [0], [0], [1], [0, 0, 1, 1], [], []>} : vector<16x32xbf16>, vector<32x50xbf16>, vector<16x50xf32> -> vector<16x50xf32>
    %c0_3 = arith.constant 0 : index
    %c0_4 = arith.constant 0 : index
    %5 = vector.load %arg3[%c0_3, %c0_4] : memref<1x50xf32, #tpu.memory_space<vmem>>, vector<1x50xf32>
    %6 = vector.broadcast %5 : vector<1x50xf32> to vector<16x50xf32>
    %7 = arith.addf %4, %6 : vector<16x50xf32>
    %cst_5 = arith.constant 0.000000e+00 : f32
    %8 = vector.broadcast %cst_5 : f32 to vector<16x50xf32>
    %9 = arith.maximumf %7, %8 : vector<16x50xf32>
    %10 = vector.extract_strided_slice %9 {offsets = [0, 0], sizes = [16, 25], strides = [1, 1]} : vector<16x50xf32> to vector<16x25xf32>
    %c0_6 = arith.constant 0 : index
    %c0_7 = arith.constant 0 : index
    %11 = vector.load %arg4[%c0_6, %c0_7] : memref<16x25xf32, #tpu.memory_space<vmem>>, vector<16x25xf32>
    tpu.vector_store %arg4[%c0_6, %c0_7], %10 {strides = array<i32>} : memref<16x25xf32, #tpu.memory_space<vmem>>, vector<16x25xf32>,
    %12 = vector.extract_strided_slice %9 {offsets = [0, 25], sizes = [16, 25], strides = [1, 1]} : vector<16x50xf32> to vector<16x25xf32>
    %c0_8 = arith.constant 0 : index
    %c0_9 = arith.constant 0 : index
    %13 = vector.load %arg5[%c0_8, %c0_9] : memref<16x25xf32, #tpu.memory_space<vmem>>, vector<16x25xf32>
    tpu.vector_store %arg5[%c0_8, %c0_9], %12 {strides = array<i32>} : memref<16x25xf32, #tpu.memory_space<vmem>>, vector<16x25xf32>,
    return
  }
  func.func @transform_0(%arg0: i32) -> (i32, i32) {
    %c0_i32 = arith.constant 0 : i32
    %c0_i32_0 = arith.constant 0 : i32
    return %arg0, %c0_i32 : i32, i32
  }
  func.func @transform_1(%arg0: i32) -> (i32, i32) {
    %c0_i32 = arith.constant 0 : i32
    %c0_i32_0 = arith.constant 0 : i32
    %c0_i32_1 = arith.constant 0 : i32
    return %c0_i32, %c0_i32_0 : i32, i32
  }
  func.func @transform_2(%arg0: i32) -> (i32, i32) {
    %c0_i32 = arith.constant 0 : i32
    %c0_i32_0 = arith.constant 0 : i32
    %c0_i32_1 = arith.constant 0 : i32
    return %c0_i32, %c0_i32_0 : i32, i32
  }
  func.func @transform_3(%arg0: i32) -> (i32, i32) {
    %c0_i32 = arith.constant 0 : i32
    %c0_i32_0 = arith.constant 0 : i32
    return %arg0, %c0_i32 : i32, i32
  }
  func.func @transform_4(%arg0: i32) -> (i32, i32) {
    %c0_i32 = arith.constant 0 : i32
    %c0_i32_0 = arith.constant 0 : i32
    return %arg0, %c0_i32 : i32, i32
  }
}

module attributes {stable_mosaic.version = 11 : i64} {
  func.func @biaffine_kernel(%arg0: i32, %arg1: memref<1x8x25xf32, #tpu.memory_space<vmem>>, %arg2: memref<1x8x25xf32, #tpu.memory_space<vmem>>, %arg3: memref<5x25x25xf32, #tpu.memory_space<vmem>>, %arg4: memref<1x5x8x8xf32, #tpu.memory_space<vmem>>) attributes {dimension_semantics = [#tpu.dimension_semantics<parallel>], iteration_bounds = array<i64: 2>, scalar_prefetch = 0 : i64, scratch_operands = 0 : i64, tpu.core_type = #tpu.core_type<tc>, window_params = [{transform_indices = @transform_0, window_bounds = array<i64: 1, 8, 25>}, {transform_indices = @transform_1, window_bounds = array<i64: 1, 8, 25>}, {pipeline_mode = #tpu.pipeline_mode<synchronous>, transform_indices = @transform_2, window_bounds = array<i64: 5, 25, 25>}, {transform_indices = @transform_3, window_bounds = array<i64: 1, 5, 8, 8>}]} {
    %c0 = arith.constant 0 : index
    %c0_0 = arith.constant 0 : index
    %c0_1 = arith.constant 0 : index
    %0 = vector.load %arg1[%c0, %c0_0, %c0_1] : memref<1x8x25xf32, #tpu.memory_space<vmem>>, vector<1x8x25xf32>
    %1 = vector.shape_cast %0 : vector<1x8x25xf32> to vector<8x25xf32>
    %2 = arith.truncf %1 : vector<8x25xf32> to vector<8x25xbf16>
    %c0_2 = arith.constant 0 : index
    %c0_3 = arith.constant 0 : index
    %c0_4 = arith.constant 0 : index
    %3 = vector.load %arg2[%c0_2, %c0_3, %c0_4] : memref<1x8x25xf32, #tpu.memory_space<vmem>>, vector<1x8x25xf32>
    %4 = vector.shape_cast %3 : vector<1x8x25xf32> to vector<8x25xf32>
    %5 = arith.truncf %4 : vector<8x25xf32> to vector<8x25xbf16>
    %c0_5 = arith.constant 0 : index
    %c0_6 = arith.constant 0 : index
    %c0_7 = arith.constant 0 : index
    %6 = vector.load %arg3[%c0_5, %c0_6, %c0_7] : memref<5x25x25xf32, #tpu.memory_space<vmem>>, vector<1x25x25xf32>
    %7 = vector.shape_cast %6 : vector<1x25x25xf32> to vector<25x25xf32>
    %8 = arith.truncf %7 : vector<25x25xf32> to vector<25x25xbf16>
    %cst = arith.constant dense<0.000000e+00> : vector<8x25xf32>
    %9 = tpu.matmul %2, %8, %cst {dimension_numbers = #tpu.dot_dimension_numbers<[1], [0], [0], [1], [0, 0, 1, 1], [], []>} : vector<8x25xbf16>, vector<25x25xbf16>, vector<8x25xf32> -> vector<8x25xf32>
    %10 = arith.truncf %9 : vector<8x25xf32> to vector<8x25xbf16>
    %cst_8 = arith.constant dense<0.000000e+00> : vector<8x8xf32>
    %11 = tpu.matmul %10, %5, %cst_8 {dimension_numbers = #tpu.dot_dimension_numbers<[1], [1], [0], [0], [0, 0, 1, 0], [], []>} : vector<8x25xbf16>, vector<8x25xbf16>, vector<8x8xf32> -> vector<8x8xf32>
    %c0_9 = arith.constant 0 : index
    %c0_10 = arith.constant 0 : index
    %c0_11 = arith.constant 0 : index
    %c0_12 = arith.constant 0 : index
    %12 = vector.load %arg4[%c0_9, %c0_10, %c0_11, %c0_12] : memref<1x5x8x8xf32, #tpu.memory_space<vmem>>, vector<1x1x8x8xf32>
    %13 = vector.shape_cast %12 : vector<1x1x8x8xf32> to vector<8x8xf32>
    %14 = vector.shape_cast %11 : vector<8x8xf32> to vector<1x1x8x8xf32>
    tpu.vector_store %arg4[%c0_9, %c0_10, %c0_11, %c0_12], %14 {strides = array<i32>} : memref<1x5x8x8xf32, #tpu.memory_space<vmem>>, vector<1x1x8x8xf32>,
    %c1 = arith.constant 1 : index
    %c0_13 = arith.constant 0 : index
    %c0_14 = arith.constant 0 : index
    %15 = vector.load %arg3[%c1, %c0_13, %c0_14] : memref<5x25x25xf32, #tpu.memory_space<vmem>>, vector<1x25x25xf32>
    %16 = vector.shape_cast %15 : vector<1x25x25xf32> to vector<25x25xf32>
    %17 = arith.truncf %16 : vector<25x25xf32> to vector<25x25xbf16>
    %cst_15 = arith.constant dense<0.000000e+00> : vector<8x25xf32>
    %18 = tpu.matmul %2, %17, %cst_15 {dimension_numbers = #tpu.dot_dimension_numbers<[1], [0], [0], [1], [0, 0, 1, 1], [], []>} : vector<8x25xbf16>, vector<25x25xbf16>, vector<8x25xf32> -> vector<8x25xf32>
    %19 = arith.truncf %18 : vector<8x25xf32> to vector<8x25xbf16>
    %cst_16 = arith.constant dense<0.000000e+00> : vector<8x8xf32>
    %20 = tpu.matmul %19, %5, %cst_16 {dimension_numbers = #tpu.dot_dimension_numbers<[1], [1], [0], [0], [0, 0, 1, 0], [], []>} : vector<8x25xbf16>, vector<8x25xbf16>, vector<8x8xf32> -> vector<8x8xf32>
    %c0_17 = arith.constant 0 : index
    %c1_18 = arith.constant 1 : index
    %c0_19 = arith.constant 0 : index
    %c0_20 = arith.constant 0 : index
    %21 = vector.load %arg4[%c0_17, %c1_18, %c0_19, %c0_20] : memref<1x5x8x8xf32, #tpu.memory_space<vmem>>, vector<1x1x8x8xf32>
    %22 = vector.shape_cast %21 : vector<1x1x8x8xf32> to vector<8x8xf32>
    %23 = vector.shape_cast %20 : vector<8x8xf32> to vector<1x1x8x8xf32>
    tpu.vector_store %arg4[%c0_17, %c1_18, %c0_19, %c0_20], %23 {strides = array<i32>} : memref<1x5x8x8xf32, #tpu.memory_space<vmem>>, vector<1x1x8x8xf32>,
    %c2 = arith.constant 2 : index
    %c0_21 = arith.constant 0 : index
    %c0_22 = arith.constant 0 : index
    %24 = vector.load %arg3[%c2, %c0_21, %c0_22] : memref<5x25x25xf32, #tpu.memory_space<vmem>>, vector<1x25x25xf32>
    %25 = vector.shape_cast %24 : vector<1x25x25xf32> to vector<25x25xf32>
    %26 = arith.truncf %25 : vector<25x25xf32> to vector<25x25xbf16>
    %cst_23 = arith.constant dense<0.000000e+00> : vector<8x25xf32>
    %27 = tpu.matmul %2, %26, %cst_23 {dimension_numbers = #tpu.dot_dimension_numbers<[1], [0], [0], [1], [0, 0, 1, 1], [], []>} : vector<8x25xbf16>, vector<25x25xbf16>, vector<8x25xf32> -> vector<8x25xf32>
    %28 = arith.truncf %27 : vector<8x25xf32> to vector<8x25xbf16>
    %cst_24 = arith.constant dense<0.000000e+00> : vector<8x8xf32>
    %29 = tpu.matmul %28, %5, %cst_24 {dimension_numbers = #tpu.dot_dimension_numbers<[1], [1], [0], [0], [0, 0, 1, 0], [], []>} : vector<8x25xbf16>, vector<8x25xbf16>, vector<8x8xf32> -> vector<8x8xf32>
    %c0_25 = arith.constant 0 : index
    %c2_26 = arith.constant 2 : index
    %c0_27 = arith.constant 0 : index
    %c0_28 = arith.constant 0 : index
    %30 = vector.load %arg4[%c0_25, %c2_26, %c0_27, %c0_28] : memref<1x5x8x8xf32, #tpu.memory_space<vmem>>, vector<1x1x8x8xf32>
    %31 = vector.shape_cast %30 : vector<1x1x8x8xf32> to vector<8x8xf32>
    %32 = vector.shape_cast %29 : vector<8x8xf32> to vector<1x1x8x8xf32>
    tpu.vector_store %arg4[%c0_25, %c2_26, %c0_27, %c0_28], %32 {strides = array<i32>} : memref<1x5x8x8xf32, #tpu.memory_space<vmem>>, vector<1x1x8x8xf32>,
    %c3 = arith.constant 3 : index
    %c0_29 = arith.constant 0 : index
    %c0_30 = arith.constant 0 : index
    %33 = vector.load %arg3[%c3, %c0_29, %c0_30] : memref<5x25x25xf32, #tpu.memory_space<vmem>>, vector<1x25x25xf32>
    %34 = vector.shape_cast %33 : vector<1x25x25xf32> to vector<25x25xf32>
    %35 = arith.truncf %34 : vector<25x25xf32> to vector<25x25xbf16>
    %cst_31 = arith.constant dense<0.000000e+00> : vector<8x25xf32>
    %36 = tpu.matmul %2, %35, %cst_31 {dimension_numbers = #tpu.dot_dimension_numbers<[1], [0], [0], [1], [0, 0, 1, 1], [], []>} : vector<8x25xbf16>, vector<25x25xbf16>, vector<8x25xf32> -> vector<8x25xf32>
    %37 = arith.truncf %36 : vector<8x25xf32> to vector<8x25xbf16>
    %cst_32 = arith.constant dense<0.000000e+00> : vector<8x8xf32>
    %38 = tpu.matmul %37, %5, %cst_32 {dimension_numbers = #tpu.dot_dimension_numbers<[1], [1], [0], [0], [0, 0, 1, 0], [], []>} : vector<8x25xbf16>, vector<8x25xbf16>, vector<8x8xf32> -> vector<8x8xf32>
    %c0_33 = arith.constant 0 : index
    %c3_34 = arith.constant 3 : index
    %c0_35 = arith.constant 0 : index
    %c0_36 = arith.constant 0 : index
    %39 = vector.load %arg4[%c0_33, %c3_34, %c0_35, %c0_36] : memref<1x5x8x8xf32, #tpu.memory_space<vmem>>, vector<1x1x8x8xf32>
    %40 = vector.shape_cast %39 : vector<1x1x8x8xf32> to vector<8x8xf32>
    %41 = vector.shape_cast %38 : vector<8x8xf32> to vector<1x1x8x8xf32>
    tpu.vector_store %arg4[%c0_33, %c3_34, %c0_35, %c0_36], %41 {strides = array<i32>} : memref<1x5x8x8xf32, #tpu.memory_space<vmem>>, vector<1x1x8x8xf32>,
    %c4 = arith.constant 4 : index
    %c0_37 = arith.constant 0 : index
    %c0_38 = arith.constant 0 : index
    %42 = vector.load %arg3[%c4, %c0_37, %c0_38] : memref<5x25x25xf32, #tpu.memory_space<vmem>>, vector<1x25x25xf32>
    %43 = vector.shape_cast %42 : vector<1x25x25xf32> to vector<25x25xf32>
    %44 = arith.truncf %43 : vector<25x25xf32> to vector<25x25xbf16>
    %cst_39 = arith.constant dense<0.000000e+00> : vector<8x25xf32>
    %45 = tpu.matmul %2, %44, %cst_39 {dimension_numbers = #tpu.dot_dimension_numbers<[1], [0], [0], [1], [0, 0, 1, 1], [], []>} : vector<8x25xbf16>, vector<25x25xbf16>, vector<8x25xf32> -> vector<8x25xf32>
    %46 = arith.truncf %45 : vector<8x25xf32> to vector<8x25xbf16>
    %cst_40 = arith.constant dense<0.000000e+00> : vector<8x8xf32>
    %47 = tpu.matmul %46, %5, %cst_40 {dimension_numbers = #tpu.dot_dimension_numbers<[1], [1], [0], [0], [0, 0, 1, 0], [], []>} : vector<8x25xbf16>, vector<8x25xbf16>, vector<8x8xf32> -> vector<8x8xf32>
    %c0_41 = arith.constant 0 : index
    %c4_42 = arith.constant 4 : index
    %c0_43 = arith.constant 0 : index
    %c0_44 = arith.constant 0 : index
    %48 = vector.load %arg4[%c0_41, %c4_42, %c0_43, %c0_44] : memref<1x5x8x8xf32, #tpu.memory_space<vmem>>, vector<1x1x8x8xf32>
    %49 = vector.shape_cast %48 : vector<1x1x8x8xf32> to vector<8x8xf32>
    %50 = vector.shape_cast %47 : vector<8x8xf32> to vector<1x1x8x8xf32>
    tpu.vector_store %arg4[%c0_41, %c4_42, %c0_43, %c0_44], %50 {strides = array<i32>} : memref<1x5x8x8xf32, #tpu.memory_space<vmem>>, vector<1x1x8x8xf32>,
    return
  }
  func.func @transform_0(%arg0: i32) -> (i32, i32, i32) {
    %c0_i32 = arith.constant 0 : i32
    %c0_i32_0 = arith.constant 0 : i32
    %c0_i32_1 = arith.constant 0 : i32
    return %arg0, %c0_i32, %c0_i32_0 : i32, i32, i32
  }
  func.func @transform_1(%arg0: i32) -> (i32, i32, i32) {
    %c0_i32 = arith.constant 0 : i32
    %c0_i32_0 = arith.constant 0 : i32
    %c0_i32_1 = arith.constant 0 : i32
    return %arg0, %c0_i32, %c0_i32_0 : i32, i32, i32
  }
  func.func @transform_2(%arg0: i32) -> (i32, i32, i32) {
    %c0_i32 = arith.constant 0 : i32
    %c0_i32_0 = arith.constant 0 : i32
    %c0_i32_1 = arith.constant 0 : i32
    %c0_i32_2 = arith.constant 0 : i32
    return %c0_i32, %c0_i32_0, %c0_i32_1 : i32, i32, i32
  }
  func.func @transform_3(%arg0: i32) -> (i32, i32, i32, i32) {
    %c0_i32 = arith.constant 0 : i32
    %c0_i32_0 = arith.constant 0 : i32
    %c0_i32_1 = arith.constant 0 : i32
    %c0_i32_2 = arith.constant 0 : i32
    return %arg0, %c0_i32, %c0_i32_0, %c0_i32_1 : i32, i32, i32, i32
  }
}

</mosaic_0001>

<llo_original>
// kernel: ner_network_forward.4
$region0: #{ner_network_forward.4}
  #allocation0 [shape = 'u32[]', space=smem, size = 0x4, offset = 0x4, fixed_abs, tag = 'smem constant byte address 0x4 - core index']
  #allocation1 [shape = 'u32[144,128]{1,0:T(1,128)}', space=vmem, size = 0x12000, scoped, tag = 'internal scratch']
  %s0 = inlined_call_operand.vmem [shape: f32[16,32], index: 0, kind: input, shape index: {}]
  %s1 = inlined_call_operand.vmem [shape: f32[32,50], index: 1, kind: input, shape index: {}]
  %s2 = inlined_call_operand.vmem [shape: f32[1,50], index: 2, kind: input, shape index: {}]
  %s3 = inlined_call_operand.vmem [shape: f32[16,25], index: 3, kind: output, shape index: {0}]
  %s4 = inlined_call_operand.vmem [shape: f32[16,25], index: 4, kind: output, shape index: {1}]
  %5 = xla_tuple %s3, %s4
  %s6 = sld [smem:[#allocation0]]
  $region30: #{ner_network_forward.4} parent=0
    _
  %s8 = ssub.s32 1, %s6
  %s9 = scalar_select 0, %s8, %s6
  // Predicated region
  $region2: #{ner_network_forward.4} parent=0 // pred_check
    _
  $region3: #{ner_network_forward.4} parent=0 // pred_check_branch
    %11 = sbr.rel (0) target = $region5
  $region4: #{ner_network_forward.4} parent=0 // pred_region
    _
  $region5: #{ner_network_forward.4} parent=0 // pred_fallthru
    _
  // Predicated region
  $region6: #{ner_network_forward.4} parent=0 // pred_check
    _
  $region7: #{ner_network_forward.4} parent=0 // pred_check_branch
    %13 = sbr.rel (0) target = $region9
  $region8: #{ner_network_forward.4} parent=0 // pred_region
    _
  $region9: #{ner_network_forward.4} parent=0 // pred_fallthru
    _
  // Predicated region
  $region10: #{ner_network_forward.4} parent=0 // pred_check
    _
  $region11: #{ner_network_forward.4} parent=0 // pred_check_branch
    %15 = sbr.rel (0) target = $region13
  $region12: #{ner_network_forward.4} parent=0 // pred_region
    _
  $region13: #{ner_network_forward.4} parent=0 // pred_fallthru
    _
  %v17 = vld [vmem:[%s0] sm:$0xff]
  %v18 = vld [vmem:[%s0 + $0x8] sm:$0xff]
  %v19 = vpack.c.bf16 %v18, %v17
  %v20 = vld [vmem:[%s1] sm:$0xff]
  %v21 = vld [vmem:[%s1 + $0x8] sm:$0xff]
  %v22 = vld [vmem:[%s1 + $0x10] sm:$0xff]
  %v23 = vld [vmem:[%s1 + $0x18] sm:$0xff]
  %v24 = vpack.c.bf16 %v21, %v20
  %v25 = vpack.c.bf16 %v23, %v22
  %v26 = vld [vmem:[%s2] sm:$0x1]
  %v28 = vlaneseq
  %v29 = vshrl.u32 %v28, 7
  %v30 = vsub.s32 0, %v29
  %v31 = vrot.slane %v26, %v30
  %vm33 = vcmask 261120
  %v35 = vsel %vm33, %v19, 0
  %37 = vmatprep.subr.bf16.mxu0 0
  %38 = vmatpush1.bf16.msra.mxu0 %v24
  %39 = vmatprep.subr.bf16.mxu0 0
  %40 = vmatpush1.bf16.msra.mxu0 %v25
  %41 = vmatprep.subr.bf16.mxu0 0
  %42 = vmatpush1.bf16.msra.mxu0 0
  %43 = vmatprep.subr.bf16.mxu0 0
  %44 = vmatpush1.bf16.msra.mxu0 0
  %45 = vmatprep.subr.bf16.mxu0 0
  %46 = vmatpush1.bf16.msra.mxu0 0
  %47 = vmatprep.subr.bf16.mxu0 0
  %48 = vmatpush1.bf16.msra.mxu0 0
  %49 = vmatprep.subr.bf16.mxu0 0
  %50 = vmatpush1.bf16.msra.mxu0 0
  %51 = vmatprep.subr.bf16.mxu0 0
  %52 = vmatpush1.bf16.msra.mxu0 0
  %53 = vmatprep.subr.bf16.mxu0 0
  %54 = vmatpush1.bf16.msra.mxu0 0
  %55 = vmatprep.subr.bf16.mxu0 0
  %56 = vmatpush1.bf16.msra.mxu0 0
  %57 = vmatprep.subr.bf16.mxu0 0
  %58 = vmatpush1.bf16.msra.mxu0 0
  %59 = vmatprep.subr.bf16.mxu0 0
  %60 = vmatpush1.bf16.msra.mxu0 0
  %61 = vmatprep.subr.bf16.mxu0 0
  %62 = vmatpush1.bf16.msra.mxu0 0
  %63 = vmatprep.subr.bf16.mxu0 0
  %64 = vmatpush1.bf16.msra.mxu0 0
  %65 = vmatprep.subr.bf16.mxu0 0
  %66 = vmatpush1.bf16.msra.mxu0 0
  %67 = vmatprep.subr.bf16.mxu0 0
  %68 = vmatpush1.bf16.msra.mxu0 0
  %69 = vmatprep.mubr.bf16.mxu0 0
  %70 = vmatmul.mubr.bf16.gmra.mrb[0].mxu0 %v35
  %v71 = vpop.f32.mrb[0].mxu0
  %v72 = vadd.f32 %v31, %v71
  %v73 = vpop.f32.mrb[0].mxu0
  %v74 = vpop.f32.mrb[0].mxu0
  %v75 = vadd.f32 %v31, %v74
  %v76 = vpop.f32.mrb[0].mxu0
  %77 = vdwg.mxu0
  %v78 = vmax.f32 %v72, 0.0
  %v79 = vmax.f32 %v75, 0.0
  %vm80 = vcmask 203776
  %81 = vst.msk [vmem:[%s3] sm:$0xff] %vm80, %v78
  %82 = vst.msk [vmem:[%s3 + $0x8] sm:$0xff] %vm80, %v79
  %85 = vrot.lane.b32.xlu0 %v78, 103
  %v86 = vpop.permute.xlu0 %85
  %87 = vrot.lane.b32.xlu0 %v79, 103
  %v88 = vpop.permute.xlu0 %87
  %91 = vst.msk [vmem:[%s4] sm:$0xff] %vm80, %v86
  %92 = vst.msk [vmem:[%s4 + $0x8] sm:$0xff] %vm80, %v88
  // Predicated region
  $region14: #{ner_network_forward.4} parent=0 // pred_check
    _
  $region15: #{ner_network_forward.4} parent=0 // pred_check_branch
    %94 = sbr.rel (0) target = $region17
  $region16: #{ner_network_forward.4} parent=0 // pred_region
    _
  $region17: #{ner_network_forward.4} parent=0 // pred_fallthru
    _
  // Predicated region
  $region18: #{ner_network_forward.4} parent=0 // pred_check
    _
  $region19: #{ner_network_forward.4} parent=0 // pred_check_branch
    %96 = sbr.rel (0) target = $region21
  $region20: #{ner_network_forward.4} parent=0 // pred_region
    _
  $region21: #{ner_network_forward.4} parent=0 // pred_fallthru
    _
  // Predicated region
  $region22: #{ner_network_forward.4} parent=0 // pred_check
    _
  $region23: #{ner_network_forward.4} parent=0 // pred_check_branch
    %98 = sbr.rel (0) target = $region25
  $region24: #{ner_network_forward.4} parent=0 // pred_region
    _
  $region25: #{ner_network_forward.4} parent=0 // pred_fallthru
    _
  // Predicated region
  $region26: #{ner_network_forward.4} parent=0 // pred_check
    _
  $region27: #{ner_network_forward.4} parent=0 // pred_check_branch
    %100 = sbr.rel (0) target = $region29
  $region28: #{ner_network_forward.4} parent=0 // pred_region
    _
  $region29: #{ner_network_forward.4} parent=0 // pred_fallthru
    _

// kernel: ner_network_forward.3
$region0: #{ner_network_forward.3}
  #allocation0 [shape = 'u32[]', space=smem, size = 0x4, offset = 0x4, fixed_abs, tag = 'smem constant byte address 0x4 - core index']
  #allocation1 [shape = 'u32[144,128]{1,0:T(1,128)}', space=vmem, size = 0x12000, scoped, tag = 'internal scratch']
  #allocation2 [shape = 'f32[16,64]{1,0:T(8,128)}', space=vmem, size = 0x2000, scoped, tag = 'scratch operand']
  #allocation3 [shape = 'f32[16,64]{1,0:T(8,128)}', space=vmem, size = 0x2000, scoped, tag = 'scratch operand']
  %s0 = inlined_call_operand.vmem [shape: f32[16,32], index: 0, kind: input, shape index: {}]
  %s1 = inlined_call_operand.vmem [shape: f32[32,128], index: 1, kind: input, shape index: {}]
  %s2 = inlined_call_operand.vmem [shape: f32[16,64], index: 2, kind: input, shape index: {}]
  %s3 = inlined_call_operand.vmem [shape: f32[16,64], index: 3, kind: input, shape index: {}]
  %s4 = inlined_call_operand.vmem [shape: f32[1,128], index: 4, kind: input, shape index: {}]
  %s5 = inlined_call_operand.vmem [shape: f32[2,8,2,16], index: 5, kind: output, shape index: {}]
  %s6 = sld [smem:[#allocation0]]
  $region37: #{ner_network_forward.3} parent=0
    _
  %s8 = ssub.s32 1, %s6
  %s9 = scalar_select 0, %s8, %s6
  // Predicated region
  $region2: #{ner_network_forward.3} parent=0 // pred_check
    _
  $region3: #{ner_network_forward.3} parent=0 // pred_check_branch
    %11 = sbr.rel (0) target = $region5
  $region4: #{ner_network_forward.3} parent=0 // pred_region
    _
  $region5: #{ner_network_forward.3} parent=0 // pred_fallthru
    _
  // Predicated region
  $region6: #{ner_network_forward.3} parent=0 // pred_check
    _
  $region7: #{ner_network_forward.3} parent=0 // pred_check_branch
    %13 = sbr.rel (0) target = $region9
  $region8: #{ner_network_forward.3} parent=0 // pred_region
    _
  $region9: #{ner_network_forward.3} parent=0 // pred_fallthru
    _
  // Predicated region
  $region10: #{ner_network_forward.3} parent=0 // pred_check
    _
  $region11: #{ner_network_forward.3} parent=0 // pred_check_branch
    %15 = sbr.rel (0) target = $region13
  $region12: #{ner_network_forward.3} parent=0 // pred_region
    _
  $region13: #{ner_network_forward.3} parent=0 // pred_fallthru
    _
  // Predicated region
  $region14: #{ner_network_forward.3} parent=0 // pred_check
    _
  $region15: #{ner_network_forward.3} parent=0 // pred_check_branch
    %17 = sbr.rel (0) target = $region17
  $region16: #{ner_network_forward.3} parent=0 // pred_region
    _
  $region17: #{ner_network_forward.3} parent=0 // pred_fallthru
    _
  // Predicated region
  $region18: #{ner_network_forward.3} parent=0 // pred_check
    _
  $region19: #{ner_network_forward.3} parent=0 // pred_check_branch
    %19 = sbr.rel (0) target = $region21
  $region20: #{ner_network_forward.3} parent=0 // pred_region
    _
  $region21: #{ner_network_forward.3} parent=0 // pred_fallthru
    _
  %v21 = vld [vmem:[%s0] sm:$0xff]
  %v22 = vld [vmem:[%s0 + $0x8] sm:$0xff]
  %v23 = vpack.c.bf16 %v22, %v21
  %v24 = vld [vmem:[%s1] sm:$0xff]
  %v25 = vld [vmem:[%s1 + $0x8] sm:$0xff]
  %v26 = vld [vmem:[%s1 + $0x10] sm:$0xff]
  %v27 = vld [vmem:[%s1 + $0x18] sm:$0xff]
  %v28 = vpack.c.bf16 %v25, %v24
  %v29 = vpack.c.bf16 %v27, %v26
  %v30 = vld [vmem:[%s4] sm:$0x1]
  %v32 = vlaneseq
  %v33 = vshrl.u32 %v32, 7
  %v34 = vsub.s32 0, %v33
  %v35 = vrot.slane %v30, %v34
  %vm37 = vcmask 261120
  %v39 = vsel %vm37, %v23, 0
  %41 = vmatprep.subr.bf16.mxu0 0
  %42 = vmatpush1.bf16.msra.mxu0 %v28
  %43 = vmatprep.subr.bf16.mxu0 0
  %44 = vmatpush1.bf16.msra.mxu0 %v29
  %45 = vmatprep.subr.bf16.mxu0 0
  %46 = vmatpush1.bf16.msra.mxu0 0
  %47 = vmatprep.subr.bf16.mxu0 0
  %48 = vmatpush1.bf16.msra.mxu0 0
  %49 = vmatprep.subr.bf16.mxu0 0
  %50 = vmatpush1.bf16.msra.mxu0 0
  %51 = vmatprep.subr.bf16.mxu0 0
  %52 = vmatpush1.bf16.msra.mxu0 0
  %53 = vmatprep.subr.bf16.mxu0 0
  %54 = vmatpush1.bf16.msra.mxu0 0
  %55 = vmatprep.subr.bf16.mxu0 0
  %56 = vmatpush1.bf16.msra.mxu0 0
  %57 = vmatprep.subr.bf16.mxu0 0
  %58 = vmatpush1.bf16.msra.mxu0 0
  %59 = vmatprep.subr.bf16.mxu0 0
  %60 = vmatpush1.bf16.msra.mxu0 0
  %61 = vmatprep.subr.bf16.mxu0 0
  %62 = vmatpush1.bf16.msra.mxu0 0
  %63 = vmatprep.subr.bf16.mxu0 0
  %64 = vmatpush1.bf16.msra.mxu0 0
  %65 = vmatprep.subr.bf16.mxu0 0
  %66 = vmatpush1.bf16.msra.mxu0 0
  %67 = vmatprep.subr.bf16.mxu0 0
  %68 = vmatpush1.bf16.msra.mxu0 0
  %69 = vmatprep.subr.bf16.mxu0 0
  %70 = vmatpush1.bf16.msra.mxu0 0
  %71 = vmatprep.subr.bf16.mxu0 0
  %72 = vmatpush1.bf16.msra.mxu0 0
  %73 = vmatprep.mubr.bf16.mxu0 0
  %74 = vmatmul.mubr.bf16.gmra.mrb[0].mxu0 %v39
  %v75 = vpop.f32.mrb[0].mxu0
  %v76 = vadd.f32 %v35, %v75
  %v77 = vpop.f32.mrb[0].mxu0
  %v78 = vpop.f32.mrb[0].mxu0
  %v79 = vadd.f32 %v35, %v78
  %v80 = vpop.f32.mrb[0].mxu0
  %81 = vdwg.mxu0
  %vm82 = vcmask 523264
  %83 = vst.msk [vmem:[#allocation2] sm:$0xff] %vm82, %v76
  %84 = vst.msk [vmem:[#allocation2 + $0x8] sm:$0xff] %vm82, %v79
  %87 = vrot.lane.b32.xlu0 %v76, 64
  %v88 = vpop.permute.xlu0 %87
  %89 = vrot.lane.b32.xlu0 %v79, 64
  %v90 = vpop.permute.xlu0 %89
  %93 = vst.msk [vmem:[#allocation3] sm:$0xff] %vm82, %v88
  %94 = vst.msk [vmem:[#allocation3 + $0x8] sm:$0xff] %vm82, %v90
  %v95 = vld [vmem:[%s2] sm:$0xff]
  %v96 = vld [vmem:[%s2 + $0x8] sm:$0xff]
  %v97 = vpack.c.bf16 %v96, %v95
  %v98 = vld [vmem:[%s3] sm:$0xff]
  %v99 = vld [vmem:[%s3 + $0x8] sm:$0xff]
  %v100 = vpack.c.bf16 %v99, %v98
  loop: start=0, step=1, limit=8
  $region22: #{ner_network_forward.3} parent=0 // loop_pre_header
    _
  $region23: #{ner_network_forward.3} parent=0 // loop_header
    %s102 = sphi 0, %s106
    %p103 = scmp.ge.s32.totalorder %s102, 8
    %v107 = vphi 0.0, %v238
    %v108 = vphi 0.0, %v232
    %v109 = vphi 0.0, %v262
    %v110 = vphi 0.0, %v256
  $region24: #{ner_network_forward.3} parent=0 // loop_header_branch
    %105 = sbr.rel (%p103) target = $region28
  $region25: #{ner_network_forward.3} parent=0 // loop_body
    %s111 = ssub.s32 7, %s102
    %s112 = smul.u32 %s102, 2
    %s113 = scalar_lea.vmem [#allocation2], %s112
    %v114 = vld [vmem:[%s113] sm:$0x3]
    %v115 = vpack.c.bf16 %v107, %v107
    %117 = vrot.lane.b32.xlu0 %v115, 80
    %v118 = vpop.permute.xlu0 %117
    %vm119 = vcmask 130048
    %v121 = vsel %vm119, %v118, 0
    %123 = vmatprep.subr.bf16.mxu0 0
    %124 = vmatpush1.bf16.msra.mxu0 %v97
    %125 = vmatprep.subr.bf16.mxu0 0
    %126 = vmatpush1.bf16.msra.mxu0 0
    %127 = vmatprep.subr.bf16.mxu0 0
    %128 = vmatpush1.bf16.msra.mxu0 0
    %129 = vmatprep.subr.bf16.mxu0 0
    %130 = vmatpush1.bf16.msra.mxu0 0
    %131 = vmatprep.subr.bf16.mxu0 0
    %132 = vmatpush1.bf16.msra.mxu0 0
    %133 = vmatprep.subr.bf16.mxu0 0
    %134 = vmatpush1.bf16.msra.mxu0 0
    %135 = vmatprep.subr.bf16.mxu0 0
    %136 = vmatpush1.bf16.msra.mxu0 0
    %137 = vmatprep.subr.bf16.mxu0 0
    %138 = vmatpush1.bf16.msra.mxu0 0
    %139 = vmatprep.subr.bf16.mxu0 0
    %140 = vmatpush1.bf16.msra.mxu0 0
    %141 = vmatprep.subr.bf16.mxu0 0
    %142 = vmatpush1.bf16.msra.mxu0 0
    %143 = vmatprep.subr.bf16.mxu0 0
    %144 = vmatpush1.bf16.msra.mxu0 0
    %145 = vmatprep.subr.bf16.mxu0 0
    %146 = vmatpush1.bf16.msra.mxu0 0
    %147 = vmatprep.subr.bf16.mxu0 0
    %148 = vmatpush1.bf16.msra.mxu0 0
    %149 = vmatprep.subr.bf16.mxu0 0
    %150 = vmatpush1.bf16.msra.mxu0 0
    %151 = vmatprep.subr.bf16.mxu0 0
    %152 = vmatpush1.bf16.msra.mxu0 0
    %153 = vmatprep.subr.bf16.mxu0 0
    %154 = vmatpush1.bf16.msra.mxu0 0
    %155 = vmatprep.mubr.bf16.mxu0 0
    %156 = vmatmul.mubr.bf16.gmra.mrb[0].mxu0 %v121
    %v157 = vpop.f32.mrb[0].mxu0
    %v158 = vadd.f32 0.0, %v157
    %v159 = vpop.f32.mrb[0].mxu0
    %v160 = vpop.f32.mrb[0].mxu0
    %v161 = vpop.f32.mrb[0].mxu0
    %162 = vdwg.mxu0
    %v163 = vadd.f32 %v114, %v158
    %s164 = smul.u32 %s111, 2
    %s165 = scalar_lea.vmem [#allocation3], %s164
    %v166 = vld [vmem:[%s165] sm:$0x3]
    %v167 = vpack.c.bf16 %v109, %v109
    %169 = vrot.lane.b32.xlu0 %v167, 80
    %v170 = vpop.permute.xlu0 %169
    %v172 = vsel %vm119, %v170, 0
    %174 = vmatprep.subr.bf16.mxu0 0
    %175 = vmatpush1.bf16.msra.mxu0 %v100
    %176 = vmatprep.subr.bf16.mxu0 0
    %177 = vmatpush1.bf16.msra.mxu0 0
    %178 = vmatprep.subr.bf16.mxu0 0
    %179 = vmatpush1.bf16.msra.mxu0 0
    %180 = vmatprep.subr.bf16.mxu0 0
    %181 = vmatpush1.bf16.msra.mxu0 0
    %182 = vmatprep.subr.bf16.mxu0 0
    %183 = vmatpush1.bf16.msra.mxu0 0
    %184 = vmatprep.subr.bf16.mxu0 0
    %185 = vmatpush1.bf16.msra.mxu0 0
    %186 = vmatprep.subr.bf16.mxu0 0
    %187 = vmatpush1.bf16.msra.mxu0 0
    %188 = vmatprep.subr.bf16.mxu0 0
    %189 = vmatpush1.bf16.msra.mxu0 0
    %190 = vmatprep.subr.bf16.mxu0 0
    %191 = vmatpush1.bf16.msra.mxu0 0
    %192 = vmatprep.subr.bf16.mxu0 0
    %193 = vmatpush1.bf16.msra.mxu0 0
    %194 = vmatprep.subr.bf16.mxu0 0
    %195 = vmatpush1.bf16.msra.mxu0 0
    %196 = vmatprep.subr.bf16.mxu0 0
    %197 = vmatpush1.bf16.msra.mxu0 0
    %198 = vmatprep.subr.bf16.mxu0 0
    %199 = vmatpush1.bf16.msra.mxu0 0
    %200 = vmatprep.subr.bf16.mxu0 0
    %201 = vmatpush1.bf16.msra.mxu0 0
    %202 = vmatprep.subr.bf16.mxu0 0
    %203 = vmatpush1.bf16.msra.mxu0 0
    %204 = vmatprep.subr.bf16.mxu0 0
    %205 = vmatpush1.bf16.msra.mxu0 0
    %206 = vmatprep.mubr.bf16.mxu0 0
    %207 = vmatmul.mubr.bf16.gmra.mrb[0].mxu0 %v172
    %v208 = vpop.f32.mrb[0].mxu0
    %v209 = vadd.f32 0.0, %v208
    %v210 = vpop.f32.mrb[0].mxu0
    %v211 = vpop.f32.mrb[0].mxu0
    %v212 = vpop.f32.mrb[0].mxu0
    %213 = vdwg.mxu0
    %v214 = vadd.f32 %v166, %v209
    %v215 = vxor.u32 %v163, 2147483648
    %v216 = vmul.f32 %v215, 1.442695
    %v217 = vpow.pop %v216
    %v218 = vadd.f32 %v217, 1.0
    %v219 = vrcp.pop %v218
    %v220 = vmul.f32 1.0, %v219
    %v221 = vtanh.pop %v163
    %v222 = vmul.f32 %v220, %v108
    %224 = vrot.lane.b32.xlu0 %v221, 96
    %v225 = vpop.permute.xlu0 %224
    %v227 = vmul.f32 %v220, %v225
    %229 = vrot.lane.b32.xlu0 %v227, 16
    %v230 = vpop.permute.xlu0 %229
    %v232 = vadd.f32 %v222, %v230
    %v233 = vtanh.pop %v232
    %235 = vrot.lane.b32.xlu0 %v233, 32
    %v236 = vpop.permute.xlu0 %235
    %v238 = vmul.f32 %v220, %v236
    %v239 = vxor.u32 %v214, 2147483648
    %v240 = vmul.f32 %v239, 1.442695
    %v241 = vpow.pop %v240
    %v242 = vadd.f32 %v241, 1.0
    %v243 = vrcp.pop %v242
    %v244 = vmul.f32 1.0, %v243
    %v245 = vtanh.pop %v214
    %v246 = vmul.f32 %v244, %v110
    %248 = vrot.lane.b32.xlu0 %v245, 96
    %v249 = vpop.permute.xlu0 %248
    %v251 = vmul.f32 %v244, %v249
    %253 = vrot.lane.b32.xlu0 %v251, 16
    %v254 = vpop.permute.xlu0 %253
    %v256 = vadd.f32 %v246, %v254
    %v257 = vtanh.pop %v256
    %259 = vrot.lane.b32.xlu0 %v257, 32
    %v260 = vpop.permute.xlu0 %259
    %v262 = vmul.f32 %v244, %v260
    %264 = vrot.lane.b32.xlu0 %v238, 80
    %v265 = vpop.permute.xlu0 %264
    %s267 = scalar_lea.vmem %s5, %s112
    %vm268 = vcmask 123904
    %269 = vst.msk [vmem:[%s267] sm:$0x3] %vm268, %v265
    %271 = vrot.lane.b32.xlu0 %v262, 80
    %v272 = vpop.permute.xlu0 %271
    %s274 = sadd.s32 %s164, 16
    %s275 = scalar_lea.vmem %s5, %s274
    %276 = vst.msk [vmem:[%s275] sm:$0x3] %vm268, %v272
  $region26: #{ner_network_forward.3} parent=0 // loop_footer
    %s106 = sadd.s32 1, %s102
  $region27: #{ner_network_forward.3} parent=0 // loop_footer_branch
    %101 = sbr.rel target = $region23
  $region28: #{ner_network_forward.3} parent=0 // loop_exit
    _
  // Predicated region
  $region29: #{ner_network_forward.3} parent=0 // pred_check
    _
  $region30: #{ner_network_forward.3} parent=0 // pred_check_branch
    %278 = sbr.rel (0) target = $region32
  $region31: #{ner_network_forward.3} parent=0 // pred_region
    _
  $region32: #{ner_network_forward.3} parent=0 // pred_fallthru
    _
  // Predicated region
  $region33: #{ner_network_forward.3} parent=0 // pred_check
    _
  $region34: #{ner_network_forward.3} parent=0 // pred_check_branch
    %280 = sbr.rel (0) target = $region36
  $region35: #{ner_network_forward.3} parent=0 // pred_region
    _
  $region36: #{ner_network_forward.3} parent=0 // pred_fallthru
    _

// kernel: ner_network_forward.5
$region0: #{ner_network_forward.5}
  #allocation0 [shape = 'u32[]', space=smem, size = 0x4, offset = 0x4, fixed_abs, tag = 'smem constant byte address 0x4 - core index']
  #allocation1 [shape = 'u32[144,128]{1,0:T(1,128)}', space=vmem, size = 0x12000, scoped, tag = 'internal scratch']
  %s0 = inlined_call_operand.vmem [shape: f32[2,8,25], index: 0, kind: input, shape index: {}]
  %s1 = inlined_call_operand.vmem [shape: f32[2,8,25], index: 1, kind: input, shape index: {}]
  %s2 = inlined_call_operand.vmem [shape: f32[5,25,25], index: 2, kind: input, shape index: {}]
  %s3 = inlined_call_operand.hbm [shape: f32[2,5,8,8], index: 3, kind: output, shape index: {}]
  %s4 = sld [smem:[#allocation0]]
  $region45: #{ner_network_forward.5} parent=0
    _
  %s6 = ssub.s32 1, %s4
  %s7 = scalar_select 0, %s6, %s4
  $region1: #{ner_network_forward.5} parent=0
    #allocation2 [shape = 'u8[40960]{0}', space=vmem, size = 0xa000, scoped, tag = 'output window, operand 0']
    #allocation3 [shape = 's32[2]{0}', space=sflag, size = 0x8, scoped, tag = 'scoped memory for ner_network_forward.5']
    %8 = vsyncpa [#allocation3], 0
    %s9 = scalar_lea.sflag [#allocation3], 1
    %10 = vsyncpa %s9, 0
    loop: start=0, step=1, limit=4
    $region2: #{ner_network_forward.5} parent=1 // loop_pre_header
      _
    $region3: #{ner_network_forward.5} parent=1 // loop_header
      %s12 = sphi 0, %s16
      %p13 = scmp.ge.s32.totalorder %s12, 4
      %s22 = sphi 0, %s24
      %s25 = sphi 0, %s22
      %s26 = sphi 0, %s25
      %s42 = sphi 0, %s26
      %s48 = sphi 0, %s50
      %s51 = sphi 0, %s48
      %s52 = sphi 0, %s51
      %s68 = sphi 0, %s52
      %s72 = sphi 0, %s72
      %s74 = sphi 0, %s72
      %s75 = sphi 0, %s74
      %s89 = sphi 0, %s75
      %s95 = sphi 0, %s97
      %s98 = sphi 0, %s95
      %s99 = sphi 0, %s98
      %s115 = sphi 0, %s99
    $region4: #{ner_network_forward.5} parent=1 // loop_header_branch
      %15 = sbr.rel (%p13) target = $region8
    $region5: #{ner_network_forward.5} parent=1 // loop_body
      %s17 = ssub.s32 %s12, 1
      %s18 = ssub.s32 %s12, 2
      %s19 = sadd.s32 %s12, 1
      %s20 = ssub.s32 %s12, %s19
      %p21 = scmp.eq.s32.totalorder %s20, 0
      %s23 = sadd.s32 %s22, 1
      %s24 = scalar_select %p21, %s22, %s23
      %p27 = pneg %p21
      %p28 = scmp.eq.s32.totalorder %s12, 1
      %p29 = por %p27, %p28
      %p30 = scmp.ne.s32.totalorder %s22, %s25
      %p31 = scmp.eq.s32.totalorder %s12, 0
      %p32 = por %p30, %p31
      %p33 = scmp.ne.s32.totalorder %s22, %s25
      %p34 = scmp.eq.s32.totalorder %s17, 1
      %p35 = por %p33, %p34
      %p36 = scmp.ne.s32.totalorder %s25, %s26
      %p37 = scmp.eq.s32.totalorder %s17, 0
      %p38 = por %p36, %p37
      %p39 = scmp.ne.s32.totalorder %s25, %s26
      %p40 = scmp.eq.s32.totalorder %s18, 1
      %p41 = por %p39, %p40
      %p43 = scmp.ne.s32.totalorder %s26, %s42
      %p44 = scmp.eq.s32.totalorder %s18, 0
      %p45 = por %p43, %p44
      %s46 = ssub.s32 %s12, %s19
      %p47 = scmp.eq.s32.totalorder %s46, 0
      %s49 = sadd.s32 %s48, 1
      %s50 = scalar_select %p47, %s48, %s49
      %p53 = pneg %p47
      %p54 = scmp.eq.s32.totalorder %s12, 1
      %p55 = por %p53, %p54
      %p56 = scmp.ne.s32.totalorder %s48, %s51
      %p57 = scmp.eq.s32.totalorder %s12, 0
      %p58 = por %p56, %p57
      %p59 = scmp.ne.s32.totalorder %s48, %s51
      %p60 = scmp.eq.s32.totalorder %s17, 1
      %p61 = por %p59, %p60
      %p62 = scmp.ne.s32.totalorder %s51, %s52
      %p63 = scmp.eq.s32.totalorder %s17, 0
      %p64 = por %p62, %p63
      %p65 = scmp.ne.s32.totalorder %s51, %s52
      %p66 = scmp.eq.s32.totalorder %s18, 1
      %p67 = por %p65, %p66
      %p69 = scmp.ne.s32.totalorder %s52, %s68
      %p70 = scmp.eq.s32.totalorder %s18, 0
      %p71 = por %p69, %p70
      %s73 = sadd.s32 %s72, 1
      %p76 = scmp.eq.s32.totalorder %s12, 1
      %p77 = scmp.ne.s32.totalorder %s72, %s74
      %p78 = scmp.eq.s32.totalorder %s12, 0
      %p79 = por %p77, %p78
      %p80 = scmp.ne.s32.totalorder %s72, %s74
      %p81 = scmp.eq.s32.totalorder %s17, 1
      %p82 = por %p80, %p81
      %p83 = scmp.ne.s32.totalorder %s74, %s75
      %p84 = scmp.eq.s32.totalorder %s17, 0
      %p85 = por %p83, %p84
      %p86 = scmp.ne.s32.totalorder %s74, %s75
      %p87 = scmp.eq.s32.totalorder %s18, 1
      %p88 = por %p86, %p87
      %p90 = scmp.ne.s32.totalorder %s75, %s89
      %p91 = scmp.eq.s32.totalorder %s18, 0
      %p92 = por %p90, %p91
      %s93 = ssub.s32 %s12, %s19
      %p94 = scmp.eq.s32.totalorder %s93, 0
      %s96 = sadd.s32 %s95, 1
      %s97 = scalar_select %p94, %s95, %s96
      %p100 = pneg %p94
      %p101 = scmp.eq.s32.totalorder %s12, 1
      %p102 = por %p100, %p101
      %p103 = scmp.ne.s32.totalorder %s95, %s98
      %p104 = scmp.eq.s32.totalorder %s12, 0
      %p105 = por %p103, %p104
      %p106 = scmp.ne.s32.totalorder %s95, %s98
      %p107 = scmp.eq.s32.totalorder %s17, 1
      %p108 = por %p106, %p107
      %p109 = scmp.ne.s32.totalorder %s98, %s99
      %p110 = scmp.eq.s32.totalorder %s17, 0
      %p111 = por %p109, %p110
      %p112 = scmp.ne.s32.totalorder %s98, %s99
      %p113 = scmp.eq.s32.totalorder %s18, 1
      %p114 = por %p112, %p113
      %p116 = scmp.ne.s32.totalorder %s99, %s115
      %p117 = scmp.eq.s32.totalorder %s18, 0
      %p118 = por %p116, %p117
      %p119 = scmp.le.s32.totalorder 1, %s12
      %p120 = scmp.lt.s32.totalorder %s12, 3
      %p121 = pnand %p119, %p120
      %p122 = pneg %p121
      // Predicated region
      $region9: #{ner_network_forward.5} parent=5 // pred_check
        _
      $region10: #{ner_network_forward.5} parent=5 // pred_check_branch
        %124 = sbr.rel (%p121) target = $region12
      $region11: #{ner_network_forward.5} parent=5 // pred_region
        %s125 = ssub.s32 %s12, 1
        // Predicated region
        $region13: #{ner_network_forward.5} parent=11 // pred_check
          %p126 = pneg %p85
        $region14: #{ner_network_forward.5} parent=11 // pred_check_branch
          %128 = sbr.rel (%p126) target = $region16
        $region15: #{ner_network_forward.5} parent=11 // pred_region
          _
        $region16: #{ner_network_forward.5} parent=11 // pred_fallthru
          _
      $region12: #{ner_network_forward.5} parent=5 // pred_fallthru
        _
      %p129 = scmp.lt.s32.totalorder %s12, 2
      // Predicated region
      $region17: #{ner_network_forward.5} parent=5 // pred_check
        %p130 = pneg %p129
      $region18: #{ner_network_forward.5} parent=5 // pred_check_branch
        %132 = sbr.rel (%p130) target = $region20
      $region19: #{ner_network_forward.5} parent=5 // pred_region
        // Predicated region
        $region21: #{ner_network_forward.5} parent=19 // pred_check
          %p133 = pneg %p32
        $region22: #{ner_network_forward.5} parent=19 // pred_check_branch
          %135 = sbr.rel (%p133) target = $region24
        $region23: #{ner_network_forward.5} parent=19 // pred_region
          %p136 = scmp.lt.s32.totalorder %s12, 1
          %s137 = scalar_select %p136, %s12, 1
          %s138 = smul.addr %s137, 8
          %s139 = scalar_lea.vmem %s0, %s138
        $region24: #{ner_network_forward.5} parent=19 // pred_fallthru
          _
        // Predicated region
        $region25: #{ner_network_forward.5} parent=19 // pred_check
          %p140 = pneg %p58
        $region26: #{ner_network_forward.5} parent=19 // pred_check_branch
          %142 = sbr.rel (%p140) target = $region28
        $region27: #{ner_network_forward.5} parent=19 // pred_region
          %p143 = scmp.lt.s32.totalorder %s12, 1
          %s144 = scalar_select %p143, %s12, 1
          %s145 = smul.addr %s144, 8
          %s146 = scalar_lea.vmem %s1, %s145
        $region28: #{ner_network_forward.5} parent=19 // pred_fallthru
          _
      $region20: #{ner_network_forward.5} parent=5 // pred_fallthru
        _
      %p147 = scmp.le.s32.totalorder 1, %s12
      %p148 = scmp.lt.s32.totalorder %s12, 3
      %p149 = pnand %p147, %p148
      %p150 = pneg %p149
      // Predicated region
      $region29: #{ner_network_forward.5} parent=5 // pred_check
        _
      $region30: #{ner_network_forward.5} parent=5 // pred_check_branch
        %152 = sbr.rel (%p149) target = $region32
      $region31: #{ner_network_forward.5} parent=5 // pred_region
        %s153 = ssub.s32 %s12, 1
        %p154 = scmp.lt.s32.totalorder %s17, 1
        %s155 = scalar_select %p154, %s17, 1
        %s156 = smul.addr %s155, 8
        %s157 = scalar_lea.vmem %s0, %s156
        %p158 = pneg %p38
        %p159 = pneg %p35
        %p160 = scmp.lt.s32.totalorder %s17, 1
        %s161 = scalar_select %p160, %s17, 1
        %s162 = smul.addr %s161, 8
        %s163 = scalar_lea.vmem %s1, %s162
        %p164 = pneg %p64
        %p165 = pneg %p61
        %p166 = pneg %p85
        %p167 = pneg %p82
        %p168 = pneg %p111
        %p169 = pneg %p108
        %s170 = sand.u32 %s98, 1
        %s171 = scalar_lea.sflag [#allocation3], %s170
        %s172 = sand.u32 %s98, 1
        %s173 = smul.addr %s172, 40
        %s174 = scalar_lea.vmem [#allocation2], %s173
        %p175 = scmp.lt.s32.totalorder %s17, 1
        %s176 = scalar_select %p175, %s17, 1
        %s177 = smul.addr %s176, 8
        %s178 = scalar_lea.vmem %s0, %s177
        %p179 = scmp.lt.s32.totalorder %s17, 1
        %s180 = scalar_select %p179, %s17, 1
        %s181 = smul.addr %s180, 8
        %s182 = scalar_lea.vmem %s1, %s181
        %v184 = vld [vmem:[%s178] sm:$0xff]
        %v185 = vpack.c.bf16 %v184, %v184
        %v186 = vld [vmem:[%s182] sm:$0xff]
        %v187 = vpack.c.bf16 %v186, %v186
        %v188 = vld [vmem:[%s2] sm:$0xff]
        %v189 = vld [vmem:[%s2 + $0x8] sm:$0xff]
        %v190 = vld [vmem:[%s2 + $0x10] sm:$0xff]
        %v191 = vld [vmem:[%s2 + $0x18] sm:$0x1]
        %v192 = vpack.c.bf16 %v189, %v188
        %v193 = vpack.c.bf16 %v191, %v190
        %vm194 = vcmask 203776
        %v196 = vsel %vm194, %v185, 0
        %vm198 = vcmask 1043456
        %vm199 = vcmask 1044480
        %v200 = vsel %vm198, 4294967295, 65535
        %v201 = vsel %vm199, %v200, 0
        %v203 = vand.u32 %v193, %v201
        %205 = vmatprep.subr.bf16.mxu0 0
        %206 = vmatpush1.bf16.msra.mxu0 %v192
        %207 = vmatprep.subr.bf16.mxu0 0
        %208 = vmatpush1.bf16.msra.mxu0 %v203
        %209 = vmatprep.subr.bf16.mxu0 0
        %210 = vmatpush1.bf16.msra.mxu0 0
        %211 = vmatprep.subr.bf16.mxu0 0
        %212 = vmatpush1.bf16.msra.mxu0 0
        %213 = vmatprep.subr.bf16.mxu0 0
        %214 = vmatpush1.bf16.msra.mxu0 0
        %215 = vmatprep.subr.bf16.mxu0 0
        %216 = vmatpush1.bf16.msra.mxu0 0
        %217 = vmatprep.subr.bf16.mxu0 0
        %218 = vmatpush1.bf16.msra.mxu0 0
        %219 = vmatprep.subr.bf16.mxu0 0
        %220 = vmatpush1.bf16.msra.mxu0 0
        %221 = vmatprep.subr.bf16.mxu0 0
        %222 = vmatpush1.bf16.msra.mxu0 0
        %223 = vmatprep.subr.bf16.mxu0 0
        %224 = vmatpush1.bf16.msra.mxu0 0
        %225 = vmatprep.subr.bf16.mxu0 0
        %226 = vmatpush1.bf16.msra.mxu0 0
        %227 = vmatprep.subr.bf16.mxu0 0
        %228 = vmatpush1.bf16.msra.mxu0 0
        %229 = vmatprep.subr.bf16.mxu0 0
        %230 = vmatpush1.bf16.msra.mxu0 0
        %231 = vmatprep.subr.bf16.mxu0 0
        %232 = vmatpush1.bf16.msra.mxu0 0
        %233 = vmatprep.subr.bf16.mxu0 0
        %234 = vmatpush1.bf16.msra.mxu0 0
        %235 = vmatprep.subr.bf16.mxu0 0
        %236 = vmatpush1.bf16.msra.mxu0 0
        %237 = vmatprep.mubr.bf16.mxu0 0
        %238 = vmatmul.mubr.bf16.gmra.mrb[0].mxu0 %v196
        %v239 = vpop.f32.mrb[0].mxu0
        %v240 = vadd.f32 0.0, %v239
        %v241 = vpop.f32.mrb[0].mxu0
        %v242 = vpop.f32.mrb[0].mxu0
        %v243 = vpop.f32.mrb[0].mxu0
        %244 = vdwg.mxu0
        %v245 = vpack.c.bf16 %v240, %v240
        %v247 = vsel %vm194, %v245, 0
        %v250 = vsel %vm194, %v187, 0
        %252 = vmatprep.subr.bf16.mxu0 0
        %253 = vmatpush1.bf16.xpose.msra.mxu0 %v250
        %254 = vmatprep.subr.bf16.mxu0 0
        %255 = vmatpush1.bf16.xpose.msra.mxu0 0
        %256 = vmatprep.subr.bf16.mxu0 0
        %257 = vmatpush1.bf16.xpose.msra.mxu0 0
        %258 = vmatprep.subr.bf16.mxu0 0
        %259 = vmatpush1.bf16.xpose.msra.mxu0 0
        %260 = vmatprep.subr.bf16.mxu0 0
        %261 = vmatpush1.bf16.xpose.msra.mxu0 0
        %262 = vmatprep.subr.bf16.mxu0 0
        %263 = vmatpush1.bf16.xpose.msra.mxu0 0
        %264 = vmatprep.subr.bf16.mxu0 0
        %265 = vmatpush1.bf16.xpose.msra.mxu0 0
        %266 = vmatprep.subr.bf16.mxu0 0
        %267 = vmatpush1.bf16.xpose.msra.mxu0 0
        %268 = vmatprep.subr.bf16.mxu0 0
        %269 = vmatpush1.bf16.xpose.msra.mxu0 0
        %270 = vmatprep.subr.bf16.mxu0 0
        %271 = vmatpush1.bf16.xpose.msra.mxu0 0
        %272 = vmatprep.subr.bf16.mxu0 0
        %273 = vmatpush1.bf16.xpose.msra.mxu0 0
        %274 = vmatprep.subr.bf16.mxu0 0
        %275 = vmatpush1.bf16.xpose.msra.mxu0 0
        %276 = vmatprep.subr.bf16.mxu0 0
        %277 = vmatpush1.bf16.xpose.msra.mxu0 0
        %278 = vmatprep.subr.bf16.mxu0 0
        %279 = vmatpush1.bf16.xpose.msra.mxu0 0
        %280 = vmatprep.subr.bf16.mxu0 0
        %281 = vmatpush1.bf16.xpose.msra.mxu0 0
        %282 = vmatprep.subr.bf16.mxu0 0
        %283 = vmatpush1.bf16.xpose.msra.mxu0 0
        %284 = vmatprep.mubr.bf16.mxu0 0
        %285 = vmatmul.mubr.bf16.gmra.mrb[0].mxu0 %v247
        %v286 = vpop.f32.mrb[0].mxu0
        %v287 = vadd.f32 0.0, %v286
        %v288 = vpop.f32.mrb[0].mxu0
        %v289 = vpop.f32.mrb[0].mxu0
        %v290 = vpop.f32.mrb[0].mxu0
        %291 = vdwg.mxu0
        %vm292 = vcmask 64512
        %293 = vst.msk [vmem:[%s174] sm:$0xff] %vm292, %v287
        %s294 = scalar_lea.vmem %s2, 32
        %v295 = vld [vmem:[%s294] sm:$0xff]
        %v296 = vld [vmem:[%s294 + $0x8] sm:$0xff]
        %v297 = vld [vmem:[%s294 + $0x10] sm:$0xff]
        %v298 = vld [vmem:[%s294 + $0x18] sm:$0x1]
        %v299 = vpack.c.bf16 %v296, %v295
        %v300 = vpack.c.bf16 %v298, %v297
        %v302 = vand.u32 %v300, %v201
        %304 = vmatprep.subr.bf16.mxu0 0
        %305 = vmatpush1.bf16.msra.mxu0 %v299
        %306 = vmatprep.subr.bf16.mxu0 0
        %307 = vmatpush1.bf16.msra.mxu0 %v302
        %308 = vmatprep.subr.bf16.mxu0 0
        %309 = vmatpush1.bf16.msra.mxu0 0
        %310 = vmatprep.subr.bf16.mxu0 0
        %311 = vmatpush1.bf16.msra.mxu0 0
        %312 = vmatprep.subr.bf16.mxu0 0
        %313 = vmatpush1.bf16.msra.mxu0 0
        %314 = vmatprep.subr.bf16.mxu0 0
        %315 = vmatpush1.bf16.msra.mxu0 0
        %316 = vmatprep.subr.bf16.mxu0 0
        %317 = vmatpush1.bf16.msra.mxu0 0
        %318 = vmatprep.subr.bf16.mxu0 0
        %319 = vmatpush1.bf16.msra.mxu0 0
        %320 = vmatprep.subr.bf16.mxu0 0
        %321 = vmatpush1.bf16.msra.mxu0 0
        %322 = vmatprep.subr.bf16.mxu0 0
        %323 = vmatpush1.bf16.msra.mxu0 0
        %324 = vmatprep.subr.bf16.mxu0 0
        %325 = vmatpush1.bf16.msra.mxu0 0
        %326 = vmatprep.subr.bf16.mxu0 0
        %327 = vmatpush1.bf16.msra.mxu0 0
        %328 = vmatprep.subr.bf16.mxu0 0
        %329 = vmatpush1.bf16.msra.mxu0 0
        %330 = vmatprep.subr.bf16.mxu0 0
        %331 = vmatpush1.bf16.msra.mxu0 0
        %332 = vmatprep.subr.bf16.mxu0 0
        %333 = vmatpush1.bf16.msra.mxu0 0
        %334 = vmatprep.subr.bf16.mxu0 0
        %335 = vmatpush1.bf16.msra.mxu0 0
        %336 = vmatprep.mubr.bf16.mxu0 0
        %337 = vmatmul.mubr.bf16.gmra.mrb[0].mxu0 %v196
        %v338 = vpop.f32.mrb[0].mxu0
        %v339 = vadd.f32 0.0, %v338
        %v340 = vpop.f32.mrb[0].mxu0
        %v341 = vpop.f32.mrb[0].mxu0
        %v342 = vpop.f32.mrb[0].mxu0
        %343 = vdwg.mxu0
        %v344 = vpack.c.bf16 %v339, %v339
        %v346 = vsel %vm194, %v344, 0
        %348 = vmatprep.subr.bf16.mxu0 0
        %349 = vmatpush1.bf16.xpose.msra.mxu0 %v250
        %350 = vmatprep.subr.bf16.mxu0 0
        %351 = vmatpush1.bf16.xpose.msra.mxu0 0
        %352 = vmatprep.subr.bf16.mxu0 0
        %353 = vmatpush1.bf16.xpose.msra.mxu0 0
        %354 = vmatprep.subr.bf16.mxu0 0
        %355 = vmatpush1.bf16.xpose.msra.mxu0 0
        %356 = vmatprep.subr.bf16.mxu0 0
        %357 = vmatpush1.bf16.xpose.msra.mxu0 0
        %358 = vmatprep.subr.bf16.mxu0 0
        %359 = vmatpush1.bf16.xpose.msra.mxu0 0
        %360 = vmatprep.subr.bf16.mxu0 0
        %361 = vmatpush1.bf16.xpose.msra.mxu0 0
        %362 = vmatprep.subr.bf16.mxu0 0
        %363 = vmatpush1.bf16.xpose.msra.mxu0 0
        %364 = vmatprep.subr.bf16.mxu0 0
        %365 = vmatpush1.bf16.xpose.msra.mxu0 0
        %366 = vmatprep.subr.bf16.mxu0 0
        %367 = vmatpush1.bf16.xpose.msra.mxu0 0
        %368 = vmatprep.subr.bf16.mxu0 0
        %369 = vmatpush1.bf16.xpose.msra.mxu0 0
        %370 = vmatprep.subr.bf16.mxu0 0
        %371 = vmatpush1.bf16.xpose.msra.mxu0 0
        %372 = vmatprep.subr.bf16.mxu0 0
        %373 = vmatpush1.bf16.xpose.msra.mxu0 0
        %374 = vmatprep.subr.bf16.mxu0 0
        %375 = vmatpush1.bf16.xpose.msra.mxu0 0
        %376 = vmatprep.subr.bf16.mxu0 0
        %377 = vmatpush1.bf16.xpose.msra.mxu0 0
        %378 = vmatprep.subr.bf16.mxu0 0
        %379 = vmatpush1.bf16.xpose.msra.mxu0 0
        %380 = vmatprep.mubr.bf16.mxu0 0
        %381 = vmatmul.mubr.bf16.gmra.mrb[0].mxu0 %v346
        %v382 = vpop.f32.mrb[0].mxu0
        %v383 = vadd.f32 0.0, %v382
        %v384 = vpop.f32.mrb[0].mxu0
        %v385 = vpop.f32.mrb[0].mxu0
        %v386 = vpop.f32.mrb[0].mxu0
        %387 = vdwg.mxu0
        %s388 = scalar_lea.vmem %s174, 8 [#allocation2]
        %389 = vst.msk [vmem:[%s388] sm:$0xff] %vm292, %v383
        %s390 = scalar_lea.vmem %s2, 64
        %v391 = vld [vmem:[%s390] sm:$0xff]
        %v392 = vld [vmem:[%s390 + $0x8] sm:$0xff]
        %v393 = vld [vmem:[%s390 + $0x10] sm:$0xff]
        %v394 = vld [vmem:[%s390 + $0x18] sm:$0x1]
        %v395 = vpack.c.bf16 %v392, %v391
        %v396 = vpack.c.bf16 %v394, %v393
        %v398 = vand.u32 %v396, %v201
        %400 = vmatprep.subr.bf16.mxu0 0
        %401 = vmatpush1.bf16.msra.mxu0 %v395
        %402 = vmatprep.subr.bf16.mxu0 0
        %403 = vmatpush1.bf16.msra.mxu0 %v398
        %404 = vmatprep.subr.bf16.mxu0 0
        %405 = vmatpush1.bf16.msra.mxu0 0
        %406 = vmatprep.subr.bf16.mxu0 0
        %407 = vmatpush1.bf16.msra.mxu0 0
        %408 = vmatprep.subr.bf16.mxu0 0
        %409 = vmatpush1.bf16.msra.mxu0 0
        %410 = vmatprep.subr.bf16.mxu0 0
        %411 = vmatpush1.bf16.msra.mxu0 0
        %412 = vmatprep.subr.bf16.mxu0 0
        %413 = vmatpush1.bf16.msra.mxu0 0
        %414 = vmatprep.subr.bf16.mxu0 0
        %415 = vmatpush1.bf16.msra.mxu0 0
        %416 = vmatprep.subr.bf16.mxu0 0
        %417 = vmatpush1.bf16.msra.mxu0 0
        %418 = vmatprep.subr.bf16.mxu0 0
        %419 = vmatpush1.bf16.msra.mxu0 0
        %420 = vmatprep.subr.bf16.mxu0 0
        %421 = vmatpush1.bf16.msra.mxu0 0
        %422 = vmatprep.subr.bf16.mxu0 0
        %423 = vmatpush1.bf16.msra.mxu0 0
        %424 = vmatprep.subr.bf16.mxu0 0
        %425 = vmatpush1.bf16.msra.mxu0 0
        %426 = vmatprep.subr.bf16.mxu0 0
        %427 = vmatpush1.bf16.msra.mxu0 0
        %428 = vmatprep.subr.bf16.mxu0 0
        %429 = vmatpush1.bf16.msra.mxu0 0
        %430 = vmatprep.subr.bf16.mxu0 0
        %431 = vmatpush1.bf16.msra.mxu0 0
        %432 = vmatprep.mubr.bf16.mxu0 0
        %433 = vmatmul.mubr.bf16.gmra.mrb[0].mxu0 %v196
        %v434 = vpop.f32.mrb[0].mxu0
        %v435 = vadd.f32 0.0, %v434
        %v436 = vpop.f32.mrb[0].mxu0
        %v437 = vpop.f32.mrb[0].mxu0
        %v438 = vpop.f32.mrb[0].mxu0
        %439 = vdwg.mxu0
        %v440 = vpack.c.bf16 %v435, %v435
        %v442 = vsel %vm194, %v440, 0
        %444 = vmatprep.subr.bf16.mxu0 0
        %445 = vmatpush1.bf16.xpose.msra.mxu0 %v250
        %446 = vmatprep.subr.bf16.mxu0 0
        %447 = vmatpush1.bf16.xpose.msra.mxu0 0
        %448 = vmatprep.subr.bf16.mxu0 0
        %449 = vmatpush1.bf16.xpose.msra.mxu0 0
        %450 = vmatprep.subr.bf16.mxu0 0
        %451 = vmatpush1.bf16.xpose.msra.mxu0 0
        %452 = vmatprep.subr.bf16.mxu0 0
        %453 = vmatpush1.bf16.xpose.msra.mxu0 0
        %454 = vmatprep.subr.bf16.mxu0 0
        %455 = vmatpush1.bf16.xpose.msra.mxu0 0
        %456 = vmatprep.subr.bf16.mxu0 0
        %457 = vmatpush1.bf16.xpose.msra.mxu0 0
        %458 = vmatprep.subr.bf16.mxu0 0
        %459 = vmatpush1.bf16.xpose.msra.mxu0 0
        %460 = vmatprep.subr.bf16.mxu0 0
        %461 = vmatpush1.bf16.xpose.msra.mxu0 0
        %462 = vmatprep.subr.bf16.mxu0 0
        %463 = vmatpush1.bf16.xpose.msra.mxu0 0
        %464 = vmatprep.subr.bf16.mxu0 0
        %465 = vmatpush1.bf16.xpose.msra.mxu0 0
        %466 = vmatprep.subr.bf16.mxu0 0
        %467 = vmatpush1.bf16.xpose.msra.mxu0 0
        %468 = vmatprep.subr.bf16.mxu0 0
        %469 = vmatpush1.bf16.xpose.msra.mxu0 0
        %470 = vmatprep.subr.bf16.mxu0 0
        %471 = vmatpush1.bf16.xpose.msra.mxu0 0
        %472 = vmatprep.subr.bf16.mxu0 0
        %473 = vmatpush1.bf16.xpose.msra.mxu0 0
        %474 = vmatprep.subr.bf16.mxu0 0
        %475 = vmatpush1.bf16.xpose.msra.mxu0 0
        %476 = vmatprep.mubr.bf16.mxu0 0
        %477 = vmatmul.mubr.bf16.gmra.mrb[0].mxu0 %v442
        %v478 = vpop.f32.mrb[0].mxu0
        %v479 = vadd.f32 0.0, %v478
        %v480 = vpop.f32.mrb[0].mxu0
        %v481 = vpop.f32.mrb[0].mxu0
        %v482 = vpop.f32.mrb[0].mxu0
        %483 = vdwg.mxu0
        %s484 = scalar_lea.vmem %s174, 16 [#allocation2]
        %485 = vst.msk [vmem:[%s484] sm:$0xff] %vm292, %v479
        %s486 = scalar_lea.vmem %s2, 96
        %v487 = vld [vmem:[%s486] sm:$0xff]
        %v488 = vld [vmem:[%s486 + $0x8] sm:$0xff]
        %v489 = vld [vmem:[%s486 + $0x10] sm:$0xff]
        %v490 = vld [vmem:[%s486 + $0x18] sm:$0x1]
        %v491 = vpack.c.bf16 %v488, %v487
        %v492 = vpack.c.bf16 %v490, %v489
        %v494 = vand.u32 %v492, %v201
        %496 = vmatprep.subr.bf16.mxu0 0
        %497 = vmatpush1.bf16.msra.mxu0 %v491
        %498 = vmatprep.subr.bf16.mxu0 0
        %499 = vmatpush1.bf16.msra.mxu0 %v494
        %500 = vmatprep.subr.bf16.mxu0 0
        %501 = vmatpush1.bf16.msra.mxu0 0
        %502 = vmatprep.subr.bf16.mxu0 0
        %503 = vmatpush1.bf16.msra.mxu0 0
        %504 = vmatprep.subr.bf16.mxu0 0
        %505 = vmatpush1.bf16.msra.mxu0 0
        %506 = vmatprep.subr.bf16.mxu0 0
        %507 = vmatpush1.bf16.msra.mxu0 0
        %508 = vmatprep.subr.bf16.mxu0 0
        %509 = vmatpush1.bf16.msra.mxu0 0
        %510 = vmatprep.subr.bf16.mxu0 0
        %511 = vmatpush1.bf16.msra.mxu0 0
        %512 = vmatprep.subr.bf16.mxu0 0
        %513 = vmatpush1.bf16.msra.mxu0 0
        %514 = vmatprep.subr.bf16.mxu0 0
        %515 = vmatpush1.bf16.msra.mxu0 0
        %516 = vmatprep.subr.bf16.mxu0 0
        %517 = vmatpush1.bf16.msra.mxu0 0
        %518 = vmatprep.subr.bf16.mxu0 0
        %519 = vmatpush1.bf16.msra.mxu0 0
        %520 = vmatprep.subr.bf16.mxu0 0
        %521 = vmatpush1.bf16.msra.mxu0 0
        %522 = vmatprep.subr.bf16.mxu0 0
        %523 = vmatpush1.bf16.msra.mxu0 0
        %524 = vmatprep.subr.bf16.mxu0 0
        %525 = vmatpush1.bf16.msra.mxu0 0
        %526 = vmatprep.subr.bf16.mxu0 0
        %527 = vmatpush1.bf16.msra.mxu0 0
        %528 = vmatprep.mubr.bf16.mxu0 0
        %529 = vmatmul.mubr.bf16.gmra.mrb[0].mxu0 %v196
        %v530 = vpop.f32.mrb[0].mxu0
        %v531 = vadd.f32 0.0, %v530
        %v532 = vpop.f32.mrb[0].mxu0
        %v533 = vpop.f32.mrb[0].mxu0
        %v534 = vpop.f32.mrb[0].mxu0
        %535 = vdwg.mxu0
        %v536 = vpack.c.bf16 %v531, %v531
        %v538 = vsel %vm194, %v536, 0
        %540 = vmatprep.subr.bf16.mxu0 0
        %541 = vmatpush1.bf16.xpose.msra.mxu0 %v250
        %542 = vmatprep.subr.bf16.mxu0 0
        %543 = vmatpush1.bf16.xpose.msra.mxu0 0
        %544 = vmatprep.subr.bf16.mxu0 0
        %545 = vmatpush1.bf16.xpose.msra.mxu0 0
        %546 = vmatprep.subr.bf16.mxu0 0
        %547 = vmatpush1.bf16.xpose.msra.mxu0 0
        %548 = vmatprep.subr.bf16.mxu0 0
        %549 = vmatpush1.bf16.xpose.msra.mxu0 0
        %550 = vmatprep.subr.bf16.mxu0 0
        %551 = vmatpush1.bf16.xpose.msra.mxu0 0
        %552 = vmatprep.subr.bf16.mxu0 0
        %553 = vmatpush1.bf16.xpose.msra.mxu0 0
        %554 = vmatprep.subr.bf16.mxu0 0
        %555 = vmatpush1.bf16.xpose.msra.mxu0 0
        %556 = vmatprep.subr.bf16.mxu0 0
        %557 = vmatpush1.bf16.xpose.msra.mxu0 0
        %558 = vmatprep.subr.bf16.mxu0 0
        %559 = vmatpush1.bf16.xpose.msra.mxu0 0
        %560 = vmatprep.subr.bf16.mxu0 0
        %561 = vmatpush1.bf16.xpose.msra.mxu0 0
        %562 = vmatprep.subr.bf16.mxu0 0
        %563 = vmatpush1.bf16.xpose.msra.mxu0 0
        %564 = vmatprep.subr.bf16.mxu0 0
        %565 = vmatpush1.bf16.xpose.msra.mxu0 0
        %566 = vmatprep.subr.bf16.mxu0 0
        %567 = vmatpush1.bf16.xpose.msra.mxu0 0
        %568 = vmatprep.subr.bf16.mxu0 0
        %569 = vmatpush1.bf16.xpose.msra.mxu0 0
        %570 = vmatprep.subr.bf16.mxu0 0
        %571 = vmatpush1.bf16.xpose.msra.mxu0 0
        %572 = vmatprep.mubr.bf16.mxu0 0
        %573 = vmatmul.mubr.bf16.gmra.mrb[0].mxu0 %v538
        %v574 = vpop.f32.mrb[0].mxu0
        %v575 = vadd.f32 0.0, %v574
        %v576 = vpop.f32.mrb[0].mxu0
        %v577 = vpop.f32.mrb[0].mxu0
        %v578 = vpop.f32.mrb[0].mxu0
        %579 = vdwg.mxu0
        %s580 = scalar_lea.vmem %s174, 24 [#allocation2]
        %581 = vst.msk [vmem:[%s580] sm:$0xff] %vm292, %v575
        %s582 = scalar_lea.vmem %s2, 128
        %v583 = vld [vmem:[%s582] sm:$0xff]
        %v584 = vld [vmem:[%s582 + $0x8] sm:$0xff]
        %v585 = vld [vmem:[%s582 + $0x10] sm:$0xff]
        %v586 = vld [vmem:[%s582 + $0x18] sm:$0x1]
        %v587 = vpack.c.bf16 %v584, %v583
        %v588 = vpack.c.bf16 %v586, %v585
        %v590 = vand.u32 %v588, %v201
        %592 = vmatprep.subr.bf16.mxu0 0
        %593 = vmatpush1.bf16.msra.mxu0 %v587
        %594 = vmatprep.subr.bf16.mxu0 0
        %595 = vmatpush1.bf16.msra.mxu0 %v590
        %596 = vmatprep.subr.bf16.mxu0 0
        %597 = vmatpush1.bf16.msra.mxu0 0
        %598 = vmatprep.subr.bf16.mxu0 0
        %599 = vmatpush1.bf16.msra.mxu0 0
        %600 = vmatprep.subr.bf16.mxu0 0
        %601 = vmatpush1.bf16.msra.mxu0 0
        %602 = vmatprep.subr.bf16.mxu0 0
        %603 = vmatpush1.bf16.msra.mxu0 0
        %604 = vmatprep.subr.bf16.mxu0 0
        %605 = vmatpush1.bf16.msra.mxu0 0
        %606 = vmatprep.subr.bf16.mxu0 0
        %607 = vmatpush1.bf16.msra.mxu0 0
        %608 = vmatprep.subr.bf16.mxu0 0
        %609 = vmatpush1.bf16.msra.mxu0 0
        %610 = vmatprep.subr.bf16.mxu0 0
        %611 = vmatpush1.bf16.msra.mxu0 0
        %612 = vmatprep.subr.bf16.mxu0 0
        %613 = vmatpush1.bf16.msra.mxu0 0
        %614 = vmatprep.subr.bf16.mxu0 0
        %615 = vmatpush1.bf16.msra.mxu0 0
        %616 = vmatprep.subr.bf16.mxu0 0
        %617 = vmatpush1.bf16.msra.mxu0 0
        %618 = vmatprep.subr.bf16.mxu0 0
        %619 = vmatpush1.bf16.msra.mxu0 0
        %620 = vmatprep.subr.bf16.mxu0 0
        %621 = vmatpush1.bf16.msra.mxu0 0
        %622 = vmatprep.subr.bf16.mxu0 0
        %623 = vmatpush1.bf16.msra.mxu0 0
        %624 = vmatprep.mubr.bf16.mxu0 0
        %625 = vmatmul.mubr.bf16.gmra.mrb[0].mxu0 %v196
        %v626 = vpop.f32.mrb[0].mxu0
        %v627 = vadd.f32 0.0, %v626
        %v628 = vpop.f32.mrb[0].mxu0
        %v629 = vpop.f32.mrb[0].mxu0
        %v630 = vpop.f32.mrb[0].mxu0
        %631 = vdwg.mxu0
        %v632 = vpack.c.bf16 %v627, %v627
        %v634 = vsel %vm194, %v632, 0
        %636 = vmatprep.subr.bf16.mxu0 0
        %637 = vmatpush1.bf16.xpose.msra.mxu0 %v250
        %638 = vmatprep.subr.bf16.mxu0 0
        %639 = vmatpush1.bf16.xpose.msra.mxu0 0
        %640 = vmatprep.subr.bf16.mxu0 0
        %641 = vmatpush1.bf16.xpose.msra.mxu0 0
        %642 = vmatprep.subr.bf16.mxu0 0
        %643 = vmatpush1.bf16.xpose.msra.mxu0 0
        %644 = vmatprep.subr.bf16.mxu0 0
        %645 = vmatpush1.bf16.xpose.msra.mxu0 0
        %646 = vmatprep.subr.bf16.mxu0 0
        %647 = vmatpush1.bf16.xpose.msra.mxu0 0
        %648 = vmatprep.subr.bf16.mxu0 0
        %649 = vmatpush1.bf16.xpose.msra.mxu0 0
        %650 = vmatprep.subr.bf16.mxu0 0
        %651 = vmatpush1.bf16.xpose.msra.mxu0 0
        %652 = vmatprep.subr.bf16.mxu0 0
        %653 = vmatpush1.bf16.xpose.msra.mxu0 0
        %654 = vmatprep.subr.bf16.mxu0 0
        %655 = vmatpush1.bf16.xpose.msra.mxu0 0
        %656 = vmatprep.subr.bf16.mxu0 0
        %657 = vmatpush1.bf16.xpose.msra.mxu0 0
        %658 = vmatprep.subr.bf16.mxu0 0
        %659 = vmatpush1.bf16.xpose.msra.mxu0 0
        %660 = vmatprep.subr.bf16.mxu0 0
        %661 = vmatpush1.bf16.xpose.msra.mxu0 0
        %662 = vmatprep.subr.bf16.mxu0 0
        %663 = vmatpush1.bf16.xpose.msra.mxu0 0
        %664 = vmatprep.subr.bf16.mxu0 0
        %665 = vmatpush1.bf16.xpose.msra.mxu0 0
        %666 = vmatprep.subr.bf16.mxu0 0
        %667 = vmatpush1.bf16.xpose.msra.mxu0 0
        %668 = vmatprep.mubr.bf16.mxu0 0
        %669 = vmatmul.mubr.bf16.gmra.mrb[0].mxu0 %v634
        %v670 = vpop.f32.mrb[0].mxu0
        %v671 = vadd.f32 0.0, %v670
        %v672 = vpop.f32.mrb[0].mxu0
        %v673 = vpop.f32.mrb[0].mxu0
        %v674 = vpop.f32.mrb[0].mxu0
        %675 = vdwg.mxu0
        %s676 = scalar_lea.vmem %s174, 32 [#allocation2]
        %677 = vst.msk [vmem:[%s676] sm:$0xff] %vm292, %v671
        %s678 = sand.u32 %s98, 1
        %s679 = scalar_lea.sflag [#allocation3], %s678
        %s680 = sand.u32 %s98, 1
        %s681 = smul.addr %s680, 40
        %s682 = scalar_lea.vmem [#allocation2], %s681
        // Predicated region
        $region33: #{ner_network_forward.5} parent=31 // pred_check
          %p683 = pneg %p108
        $region34: #{ner_network_forward.5} parent=31 // pred_check_branch
          %685 = sbr.rel (%p683) target = $region36
        $region35: #{ner_network_forward.5} parent=31 // pred_region
          %s687 = ssub.s32 640, 640
          %688 = vsyncadd %s679, %s687
          %s689 = smul.addr %s17, 5
          %s690 = smul.addr %s689, 128
          %s691 = scalar_lea.hbm %s3, %s690
          %s692 = sshll.u32 %s682, 4
          %s693 = int_to_ptr.vmem [resolvable:$true] %s692
          %698 = dma.vmem_to_hbm [thread:$0]  %s693, 640, %s691, %s679, 128, 128, 8
        $region36: #{ner_network_forward.5} parent=31 // pred_fallthru
          _
      $region32: #{ner_network_forward.5} parent=5 // pred_fallthru
        _
      %p699 = scmp.le.s32.totalorder 2, %s12
      // Predicated region
      $region37: #{ner_network_forward.5} parent=5 // pred_check
        %p700 = pneg %p699
      $region38: #{ner_network_forward.5} parent=5 // pred_check_branch
        %702 = sbr.rel (%p700) target = $region40
      $region39: #{ner_network_forward.5} parent=5 // pred_region
        %s703 = ssub.s32 %s12, 2
        // Predicated region
        $region41: #{ner_network_forward.5} parent=39 // pred_check
          %p704 = pneg %p114
        $region42: #{ner_network_forward.5} parent=39 // pred_check_branch
          %706 = sbr.rel (%p704) target = $region44
        $region43: #{ner_network_forward.5} parent=39 // pred_region
          %s707 = sand.u32 %s99, 1
          %s708 = scalar_lea.sflag [#allocation3], %s707
          %s709 = sand.u32 %s99, 1
          %s710 = smul.addr %s709, 40
          %s711 = scalar_lea.vmem [#allocation2], %s710
          %712 = dma.done %s708, 640
        $region44: #{ner_network_forward.5} parent=39 // pred_fallthru
          _
      $region40: #{ner_network_forward.5} parent=5 // pred_fallthru
        _
    $region6: #{ner_network_forward.5} parent=1 // loop_footer
      %s16 = sadd.s32 1, %s12
    $region7: #{ner_network_forward.5} parent=1 // loop_footer_branch
      %11 = sbr.rel target = $region3
    $region8: #{ner_network_forward.5} parent=1 // loop_exit
      _
    %713 = vsyncpa [#allocation3], 1
    %s714 = scalar_lea.sflag [#allocation3], 1
    %715 = vsyncpa %s714, 1

</llo_original>
